<compile_context>
chip_gen: v5e
topology: v5e:2x2
jax: 0.10.0
libtpu: 0.0.40
codegen_flags: <defaults>
</compile_context>

<pallas_src>
import functools

import jax
import jax.numpy as jnp
from jax.experimental import pallas as pl
from jax.experimental.pallas import tpu as pltpu


# ------------------------------ fused kernel ---------------------------------
def fused_rgcn_kernel(a_ref, x_ref,
                      wr1_ref, wo1_ref, b1_ref,
                      wr2_ref, wo2_ref, b2_ref,
                      wr3_ref, wo3_ref, b3_ref,
                      wr4_ref, wo4_ref, b4_ref,
                      lw_ref, lb_ref,
                      o_ref,
                      s_col_sc, s_row_sc,
                      *, num_relations, num_nodes, tile_m, n_pad):
    R, N = num_relations, num_nodes
    t = pl.program_id(0)

    # ---- grid step 0: run all 4 RGCN layers + per-node scores into scratch ----
    @pl.when(t == 0)
    def _compute_embeddings():
        a_bf = a_ref[...]                                     # (N, R*N) bf16, node-major

        def layer(x_f32, wr_ref, wo_ref, bias_ref, relu):
            x_bf = x_f32.astype(jnp.bfloat16)
            # Per-relation input transforms, stacked along sublanes: (R*N, Cout).
            xw = jnp.concatenate(
                [jnp.dot(x_bf, wr_ref[r], preferred_element_type=jnp.float32)
                 for r in range(R)],
                axis=0).astype(jnp.bfloat16)
            # One wide aggregation matmul: lane width = Cout, K = R*N.
            agg = jnp.dot(a_bf, xw, preferred_element_type=jnp.float32)    # (N, Cout)
            root = jnp.dot(x_bf, wo_ref[...], preferred_element_type=jnp.float32)
            acc = agg + root + bias_ref[...]                               # f32
            return jnp.maximum(acc, 0.0) if relu else acc

        h = layer(x_ref[...], wr1_ref, wo1_ref, b1_ref, True)
        h = layer(h,          wr2_ref, wo2_ref, b2_ref, True)
        h = layer(h,          wr3_ref, wo3_ref, b3_ref, True)
        emb = layer(h,        wr4_ref, wo4_ref, b4_ref, False)            # (N, H) f32

        # Pairwise scorer collapses to rank-1: out[i,j] = s[i] + s[j] + b, s = emb @ w.
        w = lw_ref[...]                                       # (1, H)
        dn = (((1,), (1,)), ((), ()))                         # contract last dims
        s_col = jax.lax.dot_general(emb, w, dn,
                                    preferred_element_type=jnp.float32)   # (N, 1)
        s_row = jax.lax.dot_general(w, emb, dn,
                                    preferred_element_type=jnp.float32)   # (1, N)
        s_col_sc[...] = s_col
        if n_pad > N:
            s_row_sc[...] = jnp.zeros_like(s_row_sc)
            s_row_sc[:, :N] = s_row                           # one-time masked store
        else:
            s_row_sc[...] = s_row

    # ---- every grid step: emit one lane-dense (tile_m, n_pad) row tile ----
    row0 = pl.multiple_of(t * tile_m, tile_m)
    s_col_tile = s_col_sc[pl.ds(row0, tile_m), :]             # (tile_m, 1)
    o_ref[...] = s_col_tile + s_row_sc[...] + lb_ref[...]     # unmasked lane-dense store


# --------------------------------- wrapper ------------------------------------
def relational_gcn_forward(x, A, params, lin_w_row, lin_b, *, tm=None):
    """params = 4 tuples of (w_rel (R,Cin,Cout), w_root (Cin,Cout), bias (Cout,))."""
    R, N, _ = A.shape

    # Node-major adjacency: a_nm[i, r*N + j] = A[r, i, j]; bf16 for the MXU and to
    # halve its VMEM/HBM footprint (mean-normalized adjacency -> negligible error
    # with f32 accumulation).
    a_nm = jnp.transpose(A, (1, 0, 2)).reshape(N, R * N).astype(jnp.bfloat16)

    n_pad = ((N + 127) // 128) * 128          # lane-dense output width
    if tm is None:
        tm = next((c for c in (256, 128, 64, 32, 16, 8) if N % c == 0), N)
    if N % tm != 0:
        tm = N
    grid = (N // tm,)

    flat_inputs = [a_nm, x.astype(jnp.float32)]
    in_specs = [
        pl.BlockSpec(a_nm.shape, lambda t: (0, 0)),
        pl.BlockSpec(x.shape, lambda t: (0, 0)),
    ]
    for (w_rel, w_root, bias) in params:
        w_rel_bf = w_rel.astype(jnp.bfloat16)
        w_root_bf = w_root.astype(jnp.bfloat16)
        b2 = bias.reshape(1, -1).astype(jnp.float32)
        flat_inputs += [w_rel_bf, w_root_bf, b2]
        in_specs += [
            pl.BlockSpec(w_rel_bf.shape, lambda t: (0, 0, 0)),
            pl.BlockSpec(w_root_bf.shape, lambda t: (0, 0)),
            pl.BlockSpec(b2.shape, lambda t: (0, 0)),
        ]
    flat_inputs += [lin_w_row.astype(jnp.float32), lin_b.astype(jnp.float32)]
    in_specs += [
        pl.BlockSpec(lin_w_row.shape, lambda t: (0, 0)),
        pl.BlockSpec(lin_b.shape, lambda t: (0, 0)),
    ]

    kernel = functools.partial(fused_rgcn_kernel,
                               num_relations=R, num_nodes=N,
                               tile_m=tm, n_pad=n_pad)

    out = pl.pallas_call(
        kernel,
        out_shape=jax.ShapeDtypeStruct((N, n_pad), jnp.float32),
        grid_spec=pltpu.PrefetchScalarGridSpec(
            num_scalar_prefetch=0,
            grid=grid,
            in_specs=in_specs,
            out_specs=pl.BlockSpec((tm, n_pad), lambda t: (t, 0)),
            scratch_shapes=[
                pltpu.VMEM((N, 1), jnp.float32),      # per-node score, column form
                pltpu.VMEM((1, n_pad), jnp.float32),  # per-node score, padded row form
            ],
        ),
        compiler_params=pltpu.CompilerParams(
            # Step 0 fills score scratch consumed by later tiles -> sequential.
            dimension_semantics=("arbitrary",),
            # Above all scoped defaults (16/32 MiB), below v7x's 64 MiB physical.
            vmem_limit_bytes=48 * 1024 * 1024,
        ),
    )(*flat_inputs)

    # Drop lane padding; row-major reshape matches torch.meshgrid(indexing='ij').
    return out[:, :N].reshape(N * N, 1)


# ----------------------------------- glue --------------------------------------
def build_relation_adjacency(edge_index, edge_type, num_nodes, num_relations):
    # A[r, i, j] = (#edges j->i of type r) / (total #incoming type-r edges at i)
    # i.e. dense form of PyG RGCNConv's per-relation scatter-mean aggregation.
    src, dst = edge_index[0], edge_index[1]
    A = jnp.zeros((num_relations, num_nodes, num_nodes), jnp.float32)
    A = A.at[edge_type, dst, src].add(1.0)
    deg = A.sum(axis=2, keepdims=True)
    return jnp.where(deg > 0, A / jnp.maximum(deg, 1.0), 0.0)


def init_rgcn_params(key, num_relations, cin, cout):
    k1, k2 = jax.random.split(key)
    scale = (2.0 / (cin + cout)) ** 0.5
    w_rel = jax.random.normal(k1, (num_relations, cin, cout), jnp.float32) * scale
    w_root = jax.random.normal(k2, (cin, cout), jnp.float32) * scale
    bias = jnp.zeros((cout,), jnp.float32)
    return w_rel, w_root, bias


if __name__ == "__main__":
    num_nodes = 16
    in_channels = 8
    num_relations = 3
    hidden_channels = [32, 16]
    num_edges = 64

    key = jax.random.PRNGKey(0)
    kx, ke, kt, kp1, kp2, kp3, kp4, kl = jax.random.split(key, 8)

    x = jax.random.normal(kx, (num_nodes, in_channels), jnp.float32)
    edge_index = jax.random.randint(ke, (2, num_edges), 0, num_nodes)
    edge_type = jax.random.randint(kt, (num_edges,), 0, num_relations)

    A = build_relation_adjacency(edge_index, edge_type, num_nodes, num_relations)

    params = (
        init_rgcn_params(kp1, num_relations, in_channels, hidden_channels[0]),
        init_rgcn_params(kp2, num_relations, hidden_channels[0], hidden_channels[0]),
        init_rgcn_params(kp3, num_relations, hidden_channels[0], hidden_channels[0]),
        init_rgcn_params(kp4, num_relations, hidden_channels[0], hidden_channels[1]),
    )
    # Linear(H, 1): weight stored lane-dense as (1, H); bias as (1, 1).
    lin_w_row = jax.random.normal(kl, (1, hidden_channels[1]), jnp.float32) \
        * (1.0 / hidden_channels[1] ** 0.5)
    lin_b = jnp.zeros((1, 1), jnp.float32)

    # tm=8 -> grid=(2,) so the multi-row-tile path is exercised even at toy N.
    out = relational_gcn_forward(x, A, params, lin_w_row, lin_b, tm=8)
    jax.block_until_ready(out)
    assert out.shape == (num_nodes * num_nodes, 1)
    print("KERNEL_OK")
</pallas_src>

<mosaic_0001>
module attributes {stable_mosaic.version = 11 : i64} {
  func.func @fused_rgcn_kernel(%arg0: i32, %arg1: memref<16x48xbf16, #tpu.memory_space<vmem>>, %arg2: memref<16x8xf32, #tpu.memory_space<vmem>>, %arg3: memref<3x8x32xbf16, #tpu.memory_space<vmem>>, %arg4: memref<8x32xbf16, #tpu.memory_space<vmem>>, %arg5: memref<1x32xf32, #tpu.memory_space<vmem>>, %arg6: memref<3x32x32xbf16, #tpu.memory_space<vmem>>, %arg7: memref<32x32xbf16, #tpu.memory_space<vmem>>, %arg8: memref<1x32xf32, #tpu.memory_space<vmem>>, %arg9: memref<3x32x32xbf16, #tpu.memory_space<vmem>>, %arg10: memref<32x32xbf16, #tpu.memory_space<vmem>>, %arg11: memref<1x32xf32, #tpu.memory_space<vmem>>, %arg12: memref<3x32x16xbf16, #tpu.memory_space<vmem>>, %arg13: memref<32x16xbf16, #tpu.memory_space<vmem>>, %arg14: memref<1x16xf32, #tpu.memory_space<vmem>>, %arg15: memref<1x16xf32, #tpu.memory_space<vmem>>, %arg16: memref<1x1xf32, #tpu.memory_space<vmem>>, %arg17: memref<8x128xf32, #tpu.memory_space<vmem>>, %arg18: memref<16x1xf32, #tpu.memory_space<vmem>>, %arg19: memref<1x128xf32, #tpu.memory_space<vmem>>) attributes {dimension_semantics = [#tpu.dimension_semantics<arbitrary>], iteration_bounds = array<i64: 2>, scalar_prefetch = 0 : i64, scratch_operands = 2 : i64, tpu.core_type = #tpu.core_type<tc>, window_params = [{pipeline_mode = #tpu.pipeline_mode<synchronous>, transform_indices = @transform_0, window_bounds = array<i64: 16, 48>}, {pipeline_mode = #tpu.pipeline_mode<synchronous>, transform_indices = @transform_1, window_bounds = array<i64: 16, 8>}, {pipeline_mode = #tpu.pipeline_mode<synchronous>, transform_indices = @transform_2, window_bounds = array<i64: 3, 8, 32>}, {pipeline_mode = #tpu.pipeline_mode<synchronous>, transform_indices = @transform_3, window_bounds = array<i64: 8, 32>}, {pipeline_mode = #tpu.pipeline_mode<synchronous>, transform_indices = @transform_4, window_bounds = array<i64: 1, 32>}, {pipeline_mode = #tpu.pipeline_mode<synchronous>, transform_indices = @transform_5, window_bounds = array<i64: 3, 32, 32>}, {pipeline_mode = #tpu.pipeline_mode<synchronous>, transform_indices = @transform_6, window_bounds = array<i64: 32, 32>}, {pipeline_mode = #tpu.pipeline_mode<synchronous>, transform_indices = @transform_7, window_bounds = array<i64: 1, 32>}, {pipeline_mode = #tpu.pipeline_mode<synchronous>, transform_indices = @transform_8, window_bounds = array<i64: 3, 32, 32>}, {pipeline_mode = #tpu.pipeline_mode<synchronous>, transform_indices = @transform_9, window_bounds = array<i64: 32, 32>}, {pipeline_mode = #tpu.pipeline_mode<synchronous>, transform_indices = @transform_10, window_bounds = array<i64: 1, 32>}, {pipeline_mode = #tpu.pipeline_mode<synchronous>, transform_indices = @transform_11, window_bounds = array<i64: 3, 32, 16>}, {pipeline_mode = #tpu.pipeline_mode<synchronous>, transform_indices = @transform_12, window_bounds = array<i64: 32, 16>}, {pipeline_mode = #tpu.pipeline_mode<synchronous>, transform_indices = @transform_13, window_bounds = array<i64: 1, 16>}, {pipeline_mode = #tpu.pipeline_mode<synchronous>, transform_indices = @transform_14, window_bounds = array<i64: 1, 16>}, {pipeline_mode = #tpu.pipeline_mode<synchronous>, transform_indices = @transform_15, window_bounds = array<i64: 1, 1>}, {transform_indices = @transform_16, window_bounds = array<i64: 8, 128>}]} {
    %c0_i32 = arith.constant 0 : i32
    %0 = arith.cmpi eq, %arg0, %c0_i32 : i32
    %1 = arith.extui %0 : i1 to i32
    %c0_i32_0 = arith.constant 0 : i32
    %2 = arith.cmpi ne, %1, %c0_i32_0 : i32
    scf.if %2 {
      %c0_7 = arith.constant 0 : index
      %c0_8 = arith.constant 0 : index
      %15 = vector.load %arg1[%c0_7, %c0_8] : memref<16x48xbf16, #tpu.memory_space<vmem>>, vector<16x48xbf16>
      %c0_9 = arith.constant 0 : index
      %c0_10 = arith.constant 0 : index
      %16 = vector.load %arg2[%c0_9, %c0_10] : memref<16x8xf32, #tpu.memory_space<vmem>>, vector<16x8xf32>
      %17 = arith.truncf %16 : vector<16x8xf32> to vector<16x8xbf16>
      %c0_11 = arith.constant 0 : index
      %c0_12 = arith.constant 0 : index
      %c0_13 = arith.constant 0 : index
      %18 = vector.load %arg3[%c0_11, %c0_12, %c0_13] : memref<3x8x32xbf16, #tpu.memory_space<vmem>>, vector<1x8x32xbf16>
      %19 = vector.shape_cast %18 : vector<1x8x32xbf16> to vector<8x32xbf16>
      %cst = arith.constant dense<0.000000e+00> : vector<16x32xf32>
      %20 = tpu.matmul %17, %19, %cst {dimension_numbers = #tpu.dot_dimension_numbers<[1], [0], [0], [1], [0, 0, 1, 1], [], []>} : vector<16x8xbf16>, vector<8x32xbf16>, vector<16x32xf32> -> vector<16x32xf32>
      %c1 = arith.constant 1 : index
      %c0_14 = arith.constant 0 : index
      %c0_15 = arith.constant 0 : index
      %21 = vector.load %arg3[%c1, %c0_14, %c0_15] : memref<3x8x32xbf16, #tpu.memory_space<vmem>>, vector<1x8x32xbf16>
      %22 = vector.shape_cast %21 : vector<1x8x32xbf16> to vector<8x32xbf16>
      %cst_16 = arith.constant dense<0.000000e+00> : vector<16x32xf32>
      %23 = tpu.matmul %17, %22, %cst_16 {dimension_numbers = #tpu.dot_dimension_numbers<[1], [0], [0], [1], [0, 0, 1, 1], [], []>} : vector<16x8xbf16>, vector<8x32xbf16>, vector<16x32xf32> -> vector<16x32xf32>
      %c2 = arith.constant 2 : index
      %c0_17 = arith.constant 0 : index
      %c0_18 = arith.constant 0 : index
      %24 = vector.load %arg3[%c2, %c0_17, %c0_18] : memref<3x8x32xbf16, #tpu.memory_space<vmem>>, vector<1x8x32xbf16>
      %25 = vector.shape_cast %24 : vector<1x8x32xbf16> to vector<8x32xbf16>
      %cst_19 = arith.constant dense<0.000000e+00> : vector<16x32xf32>
      %26 = tpu.matmul %17, %25, %cst_19 {dimension_numbers = #tpu.dot_dimension_numbers<[1], [0], [0], [1], [0, 0, 1, 1], [], []>} : vector<16x8xbf16>, vector<8x32xbf16>, vector<16x32xf32> -> vector<16x32xf32>
      %27 = tpu.concatenate %20, %23, %26 in 0 : vector<16x32xf32>, vector<16x32xf32>, vector<16x32xf32> -> vector<48x32xf32>
      %28 = arith.truncf %27 : vector<48x32xf32> to vector<48x32xbf16>
      %cst_20 = arith.constant dense<0.000000e+00> : vector<16x32xf32>
      %29 = tpu.matmul %15, %28, %cst_20 {dimension_numbers = #tpu.dot_dimension_numbers<[1], [0], [0], [1], [0, 0, 1, 1], [], []>} : vector<16x48xbf16>, vector<48x32xbf16>, vector<16x32xf32> -> vector<16x32xf32>
      %c0_21 = arith.constant 0 : index
      %c0_22 = arith.constant 0 : index
      %30 = vector.load %arg4[%c0_21, %c0_22] : memref<8x32xbf16, #tpu.memory_space<vmem>>, vector<8x32xbf16>
      %cst_23 = arith.constant dense<0.000000e+00> : vector<16x32xf32>
      %31 = tpu.matmul %17, %30, %cst_23 {dimension_numbers = #tpu.dot_dimension_numbers<[1], [0], [0], [1], [0, 0, 1, 1], [], []>} : vector<16x8xbf16>, vector<8x32xbf16>, vector<16x32xf32> -> vector<16x32xf32>
      %32 = arith.addf %29, %31 : vector<16x32xf32>
      %c0_24 = arith.constant 0 : index
      %c0_25 = arith.constant 0 : index
      %33 = vector.load %arg5[%c0_24, %c0_25] : memref<1x32xf32, #tpu.memory_space<vmem>>, vector<1x32xf32>
      %34 = vector.broadcast %33 : vector<1x32xf32> to vector<16x32xf32>
      %35 = arith.addf %32, %34 : vector<16x32xf32>
      %cst_26 = arith.constant 0.000000e+00 : f32
      %36 = vector.broadcast %cst_26 : f32 to vector<16x32xf32>
      %37 = arith.maximumf %35, %36 : vector<16x32xf32>
      %38 = arith.truncf %37 : vector<16x32xf32> to vector<16x32xbf16>
      %c0_27 = arith.constant 0 : index
      %c0_28 = arith.constant 0 : index
      %c0_29 = arith.constant 0 : index
      %39 = vector.load %arg6[%c0_27, %c0_28, %c0_29] : memref<3x32x32xbf16, #tpu.memory_space<vmem>>, vector<1x32x32xbf16>
      %40 = vector.shape_cast %39 : vector<1x32x32xbf16> to vector<32x32xbf16>
      %cst_30 = arith.constant dense<0.000000e+00> : vector<16x32xf32>
      %41 = tpu.matmul %38, %40, %cst_30 {dimension_numbers = #tpu.dot_dimension_numbers<[1], [0], [0], [1], [0, 0, 1, 1], [], []>} : vector<16x32xbf16>, vector<32x32xbf16>, vector<16x32xf32> -> vector<16x32xf32>
      %c1_31 = arith.constant 1 : index
      %c0_32 = arith.constant 0 : index
      %c0_33 = arith.constant 0 : index
      %42 = vector.load %arg6[%c1_31, %c0_32, %c0_33] : memref<3x32x32xbf16, #tpu.memory_space<vmem>>, vector<1x32x32xbf16>
      %43 = vector.shape_cast %42 : vector<1x32x32xbf16> to vector<32x32xbf16>
      %cst_34 = arith.constant dense<0.000000e+00> : vector<16x32xf32>
      %44 = tpu.matmul %38, %43, %cst_34 {dimension_numbers = #tpu.dot_dimension_numbers<[1], [0], [0], [1], [0, 0, 1, 1], [], []>} : vector<16x32xbf16>, vector<32x32xbf16>, vector<16x32xf32> -> vector<16x32xf32>
      %c2_35 = arith.constant 2 : index
      %c0_36 = arith.constant 0 : index
      %c0_37 = arith.constant 0 : index
      %45 = vector.load %arg6[%c2_35, %c0_36, %c0_37] : memref<3x32x32xbf16, #tpu.memory_space<vmem>>, vector<1x32x32xbf16>
      %46 = vector.shape_cast %45 : vector<1x32x32xbf16> to vector<32x32xbf16>
      %cst_38 = arith.constant dense<0.000000e+00> : vector<16x32xf32>
      %47 = tpu.matmul %38, %46, %cst_38 {dimension_numbers = #tpu.dot_dimension_numbers<[1], [0], [0], [1], [0, 0, 1, 1], [], []>} : vector<16x32xbf16>, vector<32x32xbf16>, vector<16x32xf32> -> vector<16x32xf32>
      %48 = tpu.concatenate %41, %44, %47 in 0 : vector<16x32xf32>, vector<16x32xf32>, vector<16x32xf32> -> vector<48x32xf32>
      %49 = arith.truncf %48 : vector<48x32xf32> to vector<48x32xbf16>
      %cst_39 = arith.constant dense<0.000000e+00> : vector<16x32xf32>
      %50 = tpu.matmul %15, %49, %cst_39 {dimension_numbers = #tpu.dot_dimension_numbers<[1], [0], [0], [1], [0, 0, 1, 1], [], []>} : vector<16x48xbf16>, vector<48x32xbf16>, vector<16x32xf32> -> vector<16x32xf32>
      %c0_40 = arith.constant 0 : index
      %c0_41 = arith.constant 0 : index
      %51 = vector.load %arg7[%c0_40, %c0_41] : memref<32x32xbf16, #tpu.memory_space<vmem>>, vector<32x32xbf16>
      %cst_42 = arith.constant dense<0.000000e+00> : vector<16x32xf32>
      %52 = tpu.matmul %38, %51, %cst_42 {dimension_numbers = #tpu.dot_dimension_numbers<[1], [0], [0], [1], [0, 0, 1, 1], [], []>} : vector<16x32xbf16>, vector<32x32xbf16>, vector<16x32xf32> -> vector<16x32xf32>
      %53 = arith.addf %50, %52 : vector<16x32xf32>
      %c0_43 = arith.constant 0 : index
      %c0_44 = arith.constant 0 : index
      %54 = vector.load %arg8[%c0_43, %c0_44] : memref<1x32xf32, #tpu.memory_space<vmem>>, vector<1x32xf32>
      %55 = vector.broadcast %54 : vector<1x32xf32> to vector<16x32xf32>
      %56 = arith.addf %53, %55 : vector<16x32xf32>
      %cst_45 = arith.constant 0.000000e+00 : f32
      %57 = vector.broadcast %cst_45 : f32 to vector<16x32xf32>
      %58 = arith.maximumf %56, %57 : vector<16x32xf32>
      %59 = arith.truncf %58 : vector<16x32xf32> to vector<16x32xbf16>
      %c0_46 = arith.constant 0 : index
      %c0_47 = arith.constant 0 : index
      %c0_48 = arith.constant 0 : index
      %60 = vector.load %arg9[%c0_46, %c0_47, %c0_48] : memref<3x32x32xbf16, #tpu.memory_space<vmem>>, vector<1x32x32xbf16>
      %61 = vector.shape_cast %60 : vector<1x32x32xbf16> to vector<32x32xbf16>
      %cst_49 = arith.constant dense<0.000000e+00> : vector<16x32xf32>
      %62 = tpu.matmul %59, %61, %cst_49 {dimension_numbers = #tpu.dot_dimension_numbers<[1], [0], [0], [1], [0, 0, 1, 1], [], []>} : vector<16x32xbf16>, vector<32x32xbf16>, vector<16x32xf32> -> vector<16x32xf32>
      %c1_50 = arith.constant 1 : index
      %c0_51 = arith.constant 0 : index
      %c0_52 = arith.constant 0 : index
      %63 = vector.load %arg9[%c1_50, %c0_51, %c0_52] : memref<3x32x32xbf16, #tpu.memory_space<vmem>>, vector<1x32x32xbf16>
      %64 = vector.shape_cast %63 : vector<1x32x32xbf16> to vector<32x32xbf16>
      %cst_53 = arith.constant dense<0.000000e+00> : vector<16x32xf32>
      %65 = tpu.matmul %59, %64, %cst_53 {dimension_numbers = #tpu.dot_dimension_numbers<[1], [0], [0], [1], [0, 0, 1, 1], [], []>} : vector<16x32xbf16>, vector<32x32xbf16>, vector<16x32xf32> -> vector<16x32xf32>
      %c2_54 = arith.constant 2 : index
      %c0_55 = arith.constant 0 : index
      %c0_56 = arith.constant 0 : index
      %66 = vector.load %arg9[%c2_54, %c0_55, %c0_56] : memref<3x32x32xbf16, #tpu.memory_space<vmem>>, vector<1x32x32xbf16>
      %67 = vector.shape_cast %66 : vector<1x32x32xbf16> to vector<32x32xbf16>
      %cst_57 = arith.constant dense<0.000000e+00> : vector<16x32xf32>
      %68 = tpu.matmul %59, %67, %cst_57 {dimension_numbers = #tpu.dot_dimension_numbers<[1], [0], [0], [1], [0, 0, 1, 1], [], []>} : vector<16x32xbf16>, vector<32x32xbf16>, vector<16x32xf32> -> vector<16x32xf32>
      %69 = tpu.concatenate %62, %65, %68 in 0 : vector<16x32xf32>, vector<16x32xf32>, vector<16x32xf32> -> vector<48x32xf32>
      %70 = arith.truncf %69 : vector<48x32xf32> to vector<48x32xbf16>
      %cst_58 = arith.constant dense<0.000000e+00> : vector<16x32xf32>
      %71 = tpu.matmul %15, %70, %cst_58 {dimension_numbers = #tpu.dot_dimension_numbers<[1], [0], [0], [1], [0, 0, 1, 1], [], []>} : vector<16x48xbf16>, vector<48x32xbf16>, vector<16x32xf32> -> vector<16x32xf32>
      %c0_59 = arith.constant 0 : index
      %c0_60 = arith.constant 0 : index
      %72 = vector.load %arg10[%c0_59, %c0_60] : memref<32x32xbf16, #tpu.memory_space<vmem>>, vector<32x32xbf16>
      %cst_61 = arith.constant dense<0.000000e+00> : vector<16x32xf32>
      %73 = tpu.matmul %59, %72, %cst_61 {dimension_numbers = #tpu.dot_dimension_numbers<[1], [0], [0], [1], [0, 0, 1, 1], [], []>} : vector<16x32xbf16>, vector<32x32xbf16>, vector<16x32xf32> -> vector<16x32xf32>
      %74 = arith.addf %71, %73 : vector<16x32xf32>
      %c0_62 = arith.constant 0 : index
      %c0_63 = arith.constant 0 : index
      %75 = vector.load %arg11[%c0_62, %c0_63] : memref<1x32xf32, #tpu.memory_space<vmem>>, vector<1x32xf32>
      %76 = vector.broadcast %75 : vector<1x32xf32> to vector<16x32xf32>
      %77 = arith.addf %74, %76 : vector<16x32xf32>
      %cst_64 = arith.constant 0.000000e+00 : f32
      %78 = vector.broadcast %cst_64 : f32 to vector<16x32xf32>
      %79 = arith.maximumf %77, %78 : vector<16x32xf32>
      %80 = arith.truncf %79 : vector<16x32xf32> to vector<16x32xbf16>
      %c0_65 = arith.constant 0 : index
      %c0_66 = arith.constant 0 : index
      %c0_67 = arith.constant 0 : index
      %81 = vector.load %arg12[%c0_65, %c0_66, %c0_67] : memref<3x32x16xbf16, #tpu.memory_space<vmem>>, vector<1x32x16xbf16>
      %82 = vector.shape_cast %81 : vector<1x32x16xbf16> to vector<32x16xbf16>
      %cst_68 = arith.constant dense<0.000000e+00> : vector<16x16xf32>
      %83 = tpu.matmul %80, %82, %cst_68 {dimension_numbers = #tpu.dot_dimension_numbers<[1], [0], [0], [1], [0, 0, 1, 1], [], []>} : vector<16x32xbf16>, vector<32x16xbf16>, vector<16x16xf32> -> vector<16x16xf32>
      %c1_69 = arith.constant 1 : index
      %c0_70 = arith.constant 0 : index
      %c0_71 = arith.constant 0 : index
      %84 = vector.load %arg12[%c1_69, %c0_70, %c0_71] : memref<3x32x16xbf16, #tpu.memory_space<vmem>>, vector<1x32x16xbf16>
      %85 = vector.shape_cast %84 : vector<1x32x16xbf16> to vector<32x16xbf16>
      %cst_72 = arith.constant dense<0.000000e+00> : vector<16x16xf32>
      %86 = tpu.matmul %80, %85, %cst_72 {dimension_numbers = #tpu.dot_dimension_numbers<[1], [0], [0], [1], [0, 0, 1, 1], [], []>} : vector<16x32xbf16>, vector<32x16xbf16>, vector<16x16xf32> -> vector<16x16xf32>
      %c2_73 = arith.constant 2 : index
      %c0_74 = arith.constant 0 : index
      %c0_75 = arith.constant 0 : index
      %87 = vector.load %arg12[%c2_73, %c0_74, %c0_75] : memref<3x32x16xbf16, #tpu.memory_space<vmem>>, vector<1x32x16xbf16>
      %88 = vector.shape_cast %87 : vector<1x32x16xbf16> to vector<32x16xbf16>
      %cst_76 = arith.constant dense<0.000000e+00> : vector<16x16xf32>
      %89 = tpu.matmul %80, %88, %cst_76 {dimension_numbers = #tpu.dot_dimension_numbers<[1], [0], [0], [1], [0, 0, 1, 1], [], []>} : vector<16x32xbf16>, vector<32x16xbf16>, vector<16x16xf32> -> vector<16x16xf32>
      %90 = tpu.concatenate %83, %86, %89 in 0 : vector<16x16xf32>, vector<16x16xf32>, vector<16x16xf32> -> vector<48x16xf32>
      %91 = arith.truncf %90 : vector<48x16xf32> to vector<48x16xbf16>
      %cst_77 = arith.constant dense<0.000000e+00> : vector<16x16xf32>
      %92 = tpu.matmul %15, %91, %cst_77 {dimension_numbers = #tpu.dot_dimension_numbers<[1], [0], [0], [1], [0, 0, 1, 1], [], []>} : vector<16x48xbf16>, vector<48x16xbf16>, vector<16x16xf32> -> vector<16x16xf32>
      %c0_78 = arith.constant 0 : index
      %c0_79 = arith.constant 0 : index
      %93 = vector.load %arg13[%c0_78, %c0_79] : memref<32x16xbf16, #tpu.memory_space<vmem>>, vector<32x16xbf16>
      %cst_80 = arith.constant dense<0.000000e+00> : vector<16x16xf32>
      %94 = tpu.matmul %80, %93, %cst_80 {dimension_numbers = #tpu.dot_dimension_numbers<[1], [0], [0], [1], [0, 0, 1, 1], [], []>} : vector<16x32xbf16>, vector<32x16xbf16>, vector<16x16xf32> -> vector<16x16xf32>
      %95 = arith.addf %92, %94 : vector<16x16xf32>
      %c0_81 = arith.constant 0 : index
      %c0_82 = arith.constant 0 : index
      %96 = vector.load %arg14[%c0_81, %c0_82] : memref<1x16xf32, #tpu.memory_space<vmem>>, vector<1x16xf32>
      %97 = vector.broadcast %96 : vector<1x16xf32> to vector<16x16xf32>
      %98 = arith.addf %95, %97 : vector<16x16xf32>
      %c0_83 = arith.constant 0 : index
      %c0_84 = arith.constant 0 : index
      %99 = vector.load %arg15[%c0_83, %c0_84] : memref<1x16xf32, #tpu.memory_space<vmem>>, vector<1x16xf32>
      %cst_85 = arith.constant dense<0.000000e+00> : vector<16x1xf32>
      %100 = tpu.matmul %98, %99, %cst_85 {dimension_numbers = #tpu.dot_dimension_numbers<[1], [1], [0], [0], [0, 0, 1, 0], [], []>} : vector<16x16xf32>, vector<1x16xf32>, vector<16x1xf32> -> vector<16x1xf32>
      %cst_86 = arith.constant dense<0.000000e+00> : vector<1x16xf32>
      %101 = tpu.matmul %99, %98, %cst_86 {dimension_numbers = #tpu.dot_dimension_numbers<[1], [1], [0], [0], [0, 0, 1, 0], [], []>} : vector<1x16xf32>, vector<16x16xf32>, vector<1x16xf32> -> vector<1x16xf32>
      %c0_87 = arith.constant 0 : index
      %c0_88 = arith.constant 0 : index
      %102 = vector.load %arg18[%c0_87, %c0_88] : memref<16x1xf32, #tpu.memory_space<vmem>>, vector<16x1xf32>
      tpu.vector_store %arg18[%c0_87, %c0_88], %100 {strides = array<i32>} : memref<16x1xf32, #tpu.memory_space<vmem>>, vector<16x1xf32>,
      %cst_89 = arith.constant 0.000000e+00 : f32
      %103 = vector.broadcast %cst_89 : f32 to vector<1x128xf32>
      %c0_90 = arith.constant 0 : index
      %c0_91 = arith.constant 0 : index
      %104 = vector.load %arg19[%c0_90, %c0_91] : memref<1x128xf32, #tpu.memory_space<vmem>>, vector<1x128xf32>
      tpu.vector_store %arg19[%c0_90, %c0_91], %103 {strides = array<i32>} : memref<1x128xf32, #tpu.memory_space<vmem>>, vector<1x128xf32>,
      %c0_92 = arith.constant 0 : index
      %c0_93 = arith.constant 0 : index
      %105 = vector.load %arg19[%c0_92, %c0_93] : memref<1x128xf32, #tpu.memory_space<vmem>>, vector<1x16xf32>
      tpu.vector_store %arg19[%c0_92, %c0_93], %101 {strides = array<i32>} : memref<1x128xf32, #tpu.memory_space<vmem>>, vector<1x16xf32>,
    } else {
    }
    %c8_i32 = arith.constant 8 : i32
    %3 = arith.muli %arg0, %c8_i32 : i32
    %4 = tpu.assume_multiple %3, 8 : i32
    %5 = arith.index_cast %4 : i32 to index
    %c0 = arith.constant 0 : index
    %6 = vector.load %arg18[%5, %c0] : memref<16x1xf32, #tpu.memory_space<vmem>>, vector<8x1xf32>
    %c0_1 = arith.constant 0 : index
    %c0_2 = arith.constant 0 : index
    %7 = vector.load %arg19[%c0_1, %c0_2] : memref<1x128xf32, #tpu.memory_space<vmem>>, vector<1x128xf32>
    %8 = vector.broadcast %6 : vector<8x1xf32> to vector<8x128xf32>
    %9 = vector.broadcast %7 : vector<1x128xf32> to vector<8x128xf32>
    %10 = arith.addf %8, %9 : vector<8x128xf32>
    %c0_3 = arith.constant 0 : index
    %c0_4 = arith.constant 0 : index
    %11 = vector.load %arg16[%c0_3, %c0_4] : memref<1x1xf32, #tpu.memory_space<vmem>>, vector<1x1xf32>
    %12 = vector.broadcast %11 : vector<1x1xf32> to vector<8x128xf32>
    %13 = arith.addf %10, %12 : vector<8x128xf32>
    %c0_5 = arith.constant 0 : index
    %c0_6 = arith.constant 0 : index
    %14 = vector.load %arg17[%c0_5, %c0_6] : memref<8x128xf32, #tpu.memory_space<vmem>>, vector<8x128xf32>
    tpu.vector_store %arg17[%c0_5, %c0_6], %13 {strides = array<i32>} : memref<8x128xf32, #tpu.memory_space<vmem>>, vector<8x128xf32>,
    return
  }
  func.func @transform_0(%arg0: i32) -> (i32, i32) {
    %c0_i32 = arith.constant 0 : i32
    %c0_i32_0 = arith.constant 0 : i32
    %c0_i32_1 = arith.constant 0 : i32
    return %c0_i32, %c0_i32_0 : i32, i32
  }
  func.func @transform_1(%arg0: i32) -> (i32, i32) {
    %c0_i32 = arith.constant 0 : i32
    %c0_i32_0 = arith.constant 0 : i32
    %c0_i32_1 = arith.constant 0 : i32
    return %c0_i32, %c0_i32_0 : i32, i32
  }
  func.func @transform_2(%arg0: i32) -> (i32, i32, i32) {
    %c0_i32 = arith.constant 0 : i32
    %c0_i32_0 = arith.constant 0 : i32
    %c0_i32_1 = arith.constant 0 : i32
    %c0_i32_2 = arith.constant 0 : i32
    return %c0_i32, %c0_i32_0, %c0_i32_1 : i32, i32, i32
  }
  func.func @transform_3(%arg0: i32) -> (i32, i32) {
    %c0_i32 = arith.constant 0 : i32
    %c0_i32_0 = arith.constant 0 : i32
    %c0_i32_1 = arith.constant 0 : i32
    return %c0_i32, %c0_i32_0 : i32, i32
  }
  func.func @transform_4(%arg0: i32) -> (i32, i32) {
    %c0_i32 = arith.constant 0 : i32
    %c0_i32_0 = arith.constant 0 : i32
    %c0_i32_1 = arith.constant 0 : i32
    return %c0_i32, %c0_i32_0 : i32, i32
  }
  func.func @transform_5(%arg0: i32) -> (i32, i32, i32) {
    %c0_i32 = arith.constant 0 : i32
    %c0_i32_0 = arith.constant 0 : i32
    %c0_i32_1 = arith.constant 0 : i32
    %c0_i32_2 = arith.constant 0 : i32
    return %c0_i32, %c0_i32_0, %c0_i32_1 : i32, i32, i32
  }
  func.func @transform_6(%arg0: i32) -> (i32, i32) {
    %c0_i32 = arith.constant 0 : i32
    %c0_i32_0 = arith.constant 0 : i32
    %c0_i32_1 = arith.constant 0 : i32
    return %c0_i32, %c0_i32_0 : i32, i32
  }
  func.func @transform_7(%arg0: i32) -> (i32, i32) {
    %c0_i32 = arith.constant 0 : i32
    %c0_i32_0 = arith.constant 0 : i32
    %c0_i32_1 = arith.constant 0 : i32
    return %c0_i32, %c0_i32_0 : i32, i32
  }
  func.func @transform_8(%arg0: i32) -> (i32, i32, i32) {
    %c0_i32 = arith.constant 0 : i32
    %c0_i32_0 = arith.constant 0 : i32
    %c0_i32_1 = arith.constant 0 : i32
    %c0_i32_2 = arith.constant 0 : i32
    return %c0_i32, %c0_i32_0, %c0_i32_1 : i32, i32, i32
  }
  func.func @transform_9(%arg0: i32) -> (i32, i32) {
    %c0_i32 = arith.constant 0 : i32
    %c0_i32_0 = arith.constant 0 : i32
    %c0_i32_1 = arith.constant 0 : i32
    return %c0_i32, %c0_i32_0 : i32, i32
  }
  func.func @transform_10(%arg0: i32) -> (i32, i32) {
    %c0_i32 = arith.constant 0 : i32
    %c0_i32_0 = arith.constant 0 : i32
    %c0_i32_1 = arith.constant 0 : i32
    return %c0_i32, %c0_i32_0 : i32, i32
  }
  func.func @transform_11(%arg0: i32) -> (i32, i32, i32) {
    %c0_i32 = arith.constant 0 : i32
    %c0_i32_0 = arith.constant 0 : i32
    %c0_i32_1 = arith.constant 0 : i32
    %c0_i32_2 = arith.constant 0 : i32
    return %c0_i32, %c0_i32_0, %c0_i32_1 : i32, i32, i32
  }
  func.func @transform_12(%arg0: i32) -> (i32, i32) {
    %c0_i32 = arith.constant 0 : i32
    %c0_i32_0 = arith.constant 0 : i32
    %c0_i32_1 = arith.constant 0 : i32
    return %c0_i32, %c0_i32_0 : i32, i32
  }
  func.func @transform_13(%arg0: i32) -> (i32, i32) {
    %c0_i32 = arith.constant 0 : i32
    %c0_i32_0 = arith.constant 0 : i32
    %c0_i32_1 = arith.constant 0 : i32
    return %c0_i32, %c0_i32_0 : i32, i32
  }
  func.func @transform_14(%arg0: i32) -> (i32, i32) {
    %c0_i32 = arith.constant 0 : i32
    %c0_i32_0 = arith.constant 0 : i32
    %c0_i32_1 = arith.constant 0 : i32
    return %c0_i32, %c0_i32_0 : i32, i32
  }
  func.func @transform_15(%arg0: i32) -> (i32, i32) {
    %c0_i32 = arith.constant 0 : i32
    %c0_i32_0 = arith.constant 0 : i32
    %c0_i32_1 = arith.constant 0 : i32
    return %c0_i32, %c0_i32_0 : i32, i32
  }
  func.func @transform_16(%arg0: i32) -> (i32, i32) {
    %c0_i32 = arith.constant 0 : i32
    %c0_i32_0 = arith.constant 0 : i32
    return %arg0, %c0_i32 : i32, i32
  }
}

</mosaic_0001>

<llo_original>
// kernel: tpu_custom_call.1
$region0: #{tpu_custom_call.1}
  #allocation0 [shape = 'u32[]', space=smem, size = 0x4, offset = 0x4, fixed_abs, tag = 'smem constant byte address 0x4 - core index']
  #allocation1 [shape = 'u32[72,128]{1,0:T(1,128)}', space=vmem, size = 0x9000, scoped, tag = 'internal scratch']
  #allocation2 [shape = 'f32[16,1]{1,0:T(8,128)}', space=vmem, size = 0x2000, scoped, tag = 'scratch operand']
  #allocation3 [shape = 'f32[1,128]{1,0:T(1,128)}', space=vmem, size = 0x200, scoped, tag = 'scratch operand']
  #allocation4 [shape = 'f32[1,1]{1,0:T(1,128)S(1)}', space=vmem, size = 0x200, scoped, tag = 'scoped memory for tpu_custom_call.1']
  %s0 = inlined_call_operand.vmem [shape: bf16[16,48], index: 0, kind: input, shape index: {}]
  %s1 = inlined_call_operand.vmem [shape: f32[16,8], index: 1, kind: input, shape index: {}]
  %s2 = inlined_call_operand.hbm [shape: bf16[3,8,32], index: 2, kind: input, shape index: {}]
  %s3 = inlined_call_operand.hbm [shape: bf16[8,32], index: 3, kind: input, shape index: {}]
  %s4 = inlined_call_operand.vmem [shape: f32[1,32], index: 4, kind: input, shape index: {}]
  %s5 = inlined_call_operand.vmem [shape: bf16[3,32,32], index: 5, kind: input, shape index: {}]
  %s6 = inlined_call_operand.vmem [shape: bf16[32,32], index: 6, kind: input, shape index: {}]
  %s7 = inlined_call_operand.vmem [shape: f32[1,32], index: 7, kind: input, shape index: {}]
  %s8 = inlined_call_operand.hbm [shape: bf16[3,32,32], index: 8, kind: input, shape index: {}]
  %s9 = inlined_call_operand.vmem [shape: bf16[32,32], index: 9, kind: input, shape index: {}]
  %s10 = inlined_call_operand.vmem [shape: f32[1,32], index: 10, kind: input, shape index: {}]
  %s11 = inlined_call_operand.vmem [shape: bf16[3,32,16], index: 11, kind: input, shape index: {}]
  %s12 = inlined_call_operand.vmem [shape: bf16[32,16], index: 12, kind: input, shape index: {}]
  %s13 = inlined_call_operand.vmem [shape: f32[1,16], index: 13, kind: input, shape index: {}]
  %s14 = inlined_call_operand.vmem [shape: f32[1,16], index: 14, kind: input, shape index: {}]
  %s15 = inlined_call_operand.<no memory space> [shape: f32[1,1], index: 15, kind: input, shape index: {}]
  %s16 = inlined_call_operand.hbm [shape: f32[16,128], index: 16, kind: output, shape index: {}]
  %s17 = sld [smem:[#allocation0]]
  $region113: #{tpu_custom_call.1} parent=0
    _
  %s19 = ssub.s32 1, %s17
  %s20 = scalar_select 0, %s19, %s17
  %v21 = vstv %s15
  %22 = vst [vmem:[#allocation4] sm:$0x1] %v21
  $region1: #{tpu_custom_call.1} parent=0
    #allocation5 [shape = 'u8[6144]{0}', space=vmem, size = 0x1800, scoped, tag = 'input window, operand 2, single buffered']
    #allocation6 [shape = 's32[2]{0}', space=sflag, size = 0x8, scoped, tag = 'scoped memory for tpu_custom_call.1']
    #allocation7 [shape = 's32[2]{0}', space=sflag, size = 0x8, scoped, tag = 'scoped memory for tpu_custom_call.1']
    #allocation8 [shape = 'u8[2048]{0}', space=vmem, size = 0x800, scoped, tag = 'input window, operand 3, single buffered']
    #allocation9 [shape = 's32[1]{0}', space=sflag, size = 0x4, scoped, tag = 'scoped memory for tpu_custom_call.1']
    #allocation10 [shape = 'u8[24576]{0}', space=vmem, size = 0x6000, scoped, tag = 'input window, operand 8, single buffered']
    #allocation11 [shape = 'u8[8192]{0}', space=vmem, size = 0x2000, scoped, tag = 'output window, operand 0']
    %23 = vsyncpa [#allocation6], 0
    %24 = vsyncpa [#allocation9], 0
    %25 = vsyncpa [#allocation7], 0
    %s26 = scalar_lea.sflag [#allocation7], 1
    %27 = vsyncpa %s26, 0
    loop: start=0, step=1, limit=4
    $region2: #{tpu_custom_call.1} parent=1 // loop_pre_header
      _
    $region3: #{tpu_custom_call.1} parent=1 // loop_header
      %s29 = sphi 0, %s33
      %p30 = scmp.ge.s32.totalorder %s29, 4
      %s37 = sphi 0, %s37
      %s39 = sphi 0, %s37
      %s40 = sphi 0, %s39
      %s54 = sphi 0, %s40
      %s58 = sphi 0, %s58
      %s60 = sphi 0, %s58
      %s61 = sphi 0, %s60
      %s75 = sphi 0, %s61
      %s79 = sphi 0, %s79
      %s81 = sphi 0, %s79
      %s82 = sphi 0, %s81
      %s96 = sphi 0, %s82
      %s100 = sphi 0, %s100
      %s102 = sphi 0, %s100
      %s103 = sphi 0, %s102
      %s117 = sphi 0, %s103
      %s121 = sphi 0, %s121
      %s123 = sphi 0, %s121
      %s124 = sphi 0, %s123
      %s138 = sphi 0, %s124
      %s142 = sphi 0, %s142
      %s144 = sphi 0, %s142
      %s145 = sphi 0, %s144
      %s159 = sphi 0, %s145
      %s163 = sphi 0, %s163
      %s165 = sphi 0, %s163
      %s166 = sphi 0, %s165
      %s180 = sphi 0, %s166
      %s184 = sphi 0, %s184
      %s186 = sphi 0, %s184
      %s187 = sphi 0, %s186
      %s201 = sphi 0, %s187
      %s205 = sphi 0, %s205
      %s207 = sphi 0, %s205
      %s208 = sphi 0, %s207
      %s222 = sphi 0, %s208
      %s226 = sphi 0, %s226
      %s228 = sphi 0, %s226
      %s229 = sphi 0, %s228
      %s243 = sphi 0, %s229
      %s247 = sphi 0, %s247
      %s249 = sphi 0, %s247
      %s250 = sphi 0, %s249
      %s264 = sphi 0, %s250
      %s268 = sphi 0, %s268
      %s270 = sphi 0, %s268
      %s271 = sphi 0, %s270
      %s285 = sphi 0, %s271
      %s289 = sphi 0, %s289
      %s291 = sphi 0, %s289
      %s292 = sphi 0, %s291
      %s306 = sphi 0, %s292
      %s310 = sphi 0, %s310
      %s312 = sphi 0, %s310
      %s313 = sphi 0, %s312
      %s327 = sphi 0, %s313
      %s331 = sphi 0, %s331
      %s333 = sphi 0, %s331
      %s334 = sphi 0, %s333
      %s348 = sphi 0, %s334
      %s352 = sphi 0, %s352
      %s354 = sphi 0, %s352
      %s355 = sphi 0, %s354
      %s369 = sphi 0, %s355
      %s375 = sphi 0, %s377
      %s378 = sphi 0, %s375
      %s379 = sphi 0, %s378
      %s395 = sphi 0, %s379
    $region4: #{tpu_custom_call.1} parent=1 // loop_header_branch
      %32 = sbr.rel (%p30) target = $region8
    $region5: #{tpu_custom_call.1} parent=1 // loop_body
      %s34 = ssub.s32 %s29, 1
      %s35 = ssub.s32 %s29, 2
      %s36 = sadd.s32 %s29, 1
      %s38 = sadd.s32 %s37, 1
      %p41 = scmp.eq.s32.totalorder %s29, 1
      %p42 = scmp.ne.s32.totalorder %s37, %s39
      %p43 = scmp.eq.s32.totalorder %s29, 0
      %p44 = por %p42, %p43
      %p45 = scmp.ne.s32.totalorder %s37, %s39
      %p46 = scmp.eq.s32.totalorder %s34, 1
      %p47 = por %p45, %p46
      %p48 = scmp.ne.s32.totalorder %s39, %s40
      %p49 = scmp.eq.s32.totalorder %s34, 0
      %p50 = por %p48, %p49
      %p51 = scmp.ne.s32.totalorder %s39, %s40
      %p52 = scmp.eq.s32.totalorder %s35, 1
      %p53 = por %p51, %p52
      %p55 = scmp.ne.s32.totalorder %s40, %s54
      %p56 = scmp.eq.s32.totalorder %s35, 0
      %p57 = por %p55, %p56
      %s59 = sadd.s32 %s58, 1
      %p62 = scmp.eq.s32.totalorder %s29, 1
      %p63 = scmp.ne.s32.totalorder %s58, %s60
      %p64 = scmp.eq.s32.totalorder %s29, 0
      %p65 = por %p63, %p64
      %p66 = scmp.ne.s32.totalorder %s58, %s60
      %p67 = scmp.eq.s32.totalorder %s34, 1
      %p68 = por %p66, %p67
      %p69 = scmp.ne.s32.totalorder %s60, %s61
      %p70 = scmp.eq.s32.totalorder %s34, 0
      %p71 = por %p69, %p70
      %p72 = scmp.ne.s32.totalorder %s60, %s61
      %p73 = scmp.eq.s32.totalorder %s35, 1
      %p74 = por %p72, %p73
      %p76 = scmp.ne.s32.totalorder %s61, %s75
      %p77 = scmp.eq.s32.totalorder %s35, 0
      %p78 = por %p76, %p77
      %s80 = sadd.s32 %s79, 1
      %p83 = scmp.eq.s32.totalorder %s29, 1
      %p84 = scmp.ne.s32.totalorder %s79, %s81
      %p85 = scmp.eq.s32.totalorder %s29, 0
      %p86 = por %p84, %p85
      %p87 = scmp.ne.s32.totalorder %s79, %s81
      %p88 = scmp.eq.s32.totalorder %s34, 1
      %p89 = por %p87, %p88
      %p90 = scmp.ne.s32.totalorder %s81, %s82
      %p91 = scmp.eq.s32.totalorder %s34, 0
      %p92 = por %p90, %p91
      %p93 = scmp.ne.s32.totalorder %s81, %s82
      %p94 = scmp.eq.s32.totalorder %s35, 1
      %p95 = por %p93, %p94
      %p97 = scmp.ne.s32.totalorder %s82, %s96
      %p98 = scmp.eq.s32.totalorder %s35, 0
      %p99 = por %p97, %p98
      %s101 = sadd.s32 %s100, 1
      %p104 = scmp.eq.s32.totalorder %s29, 1
      %p105 = scmp.ne.s32.totalorder %s100, %s102
      %p106 = scmp.eq.s32.totalorder %s29, 0
      %p107 = por %p105, %p106
      %p108 = scmp.ne.s32.totalorder %s100, %s102
      %p109 = scmp.eq.s32.totalorder %s34, 1
      %p110 = por %p108, %p109
      %p111 = scmp.ne.s32.totalorder %s102, %s103
      %p112 = scmp.eq.s32.totalorder %s34, 0
      %p113 = por %p111, %p112
      %p114 = scmp.ne.s32.totalorder %s102, %s103
      %p115 = scmp.eq.s32.totalorder %s35, 1
      %p116 = por %p114, %p115
      %p118 = scmp.ne.s32.totalorder %s103, %s117
      %p119 = scmp.eq.s32.totalorder %s35, 0
      %p120 = por %p118, %p119
      %s122 = sadd.s32 %s121, 1
      %p125 = scmp.eq.s32.totalorder %s29, 1
      %p126 = scmp.ne.s32.totalorder %s121, %s123
      %p127 = scmp.eq.s32.totalorder %s29, 0
      %p128 = por %p126, %p127
      %p129 = scmp.ne.s32.totalorder %s121, %s123
      %p130 = scmp.eq.s32.totalorder %s34, 1
      %p131 = por %p129, %p130
      %p132 = scmp.ne.s32.totalorder %s123, %s124
      %p133 = scmp.eq.s32.totalorder %s34, 0
      %p134 = por %p132, %p133
      %p135 = scmp.ne.s32.totalorder %s123, %s124
      %p136 = scmp.eq.s32.totalorder %s35, 1
      %p137 = por %p135, %p136
      %p139 = scmp.ne.s32.totalorder %s124, %s138
      %p140 = scmp.eq.s32.totalorder %s35, 0
      %p141 = por %p139, %p140
      %s143 = sadd.s32 %s142, 1
      %p146 = scmp.eq.s32.totalorder %s29, 1
      %p147 = scmp.ne.s32.totalorder %s142, %s144
      %p148 = scmp.eq.s32.totalorder %s29, 0
      %p149 = por %p147, %p148
      %p150 = scmp.ne.s32.totalorder %s142, %s144
      %p151 = scmp.eq.s32.totalorder %s34, 1
      %p152 = por %p150, %p151
      %p153 = scmp.ne.s32.totalorder %s144, %s145
      %p154 = scmp.eq.s32.totalorder %s34, 0
      %p155 = por %p153, %p154
      %p156 = scmp.ne.s32.totalorder %s144, %s145
      %p157 = scmp.eq.s32.totalorder %s35, 1
      %p158 = por %p156, %p157
      %p160 = scmp.ne.s32.totalorder %s145, %s159
      %p161 = scmp.eq.s32.totalorder %s35, 0
      %p162 = por %p160, %p161
      %s164 = sadd.s32 %s163, 1
      %p167 = scmp.eq.s32.totalorder %s29, 1
      %p168 = scmp.ne.s32.totalorder %s163, %s165
      %p169 = scmp.eq.s32.totalorder %s29, 0
      %p170 = por %p168, %p169
      %p171 = scmp.ne.s32.totalorder %s163, %s165
      %p172 = scmp.eq.s32.totalorder %s34, 1
      %p173 = por %p171, %p172
      %p174 = scmp.ne.s32.totalorder %s165, %s166
      %p175 = scmp.eq.s32.totalorder %s34, 0
      %p176 = por %p174, %p175
      %p177 = scmp.ne.s32.totalorder %s165, %s166
      %p178 = scmp.eq.s32.totalorder %s35, 1
      %p179 = por %p177, %p178
      %p181 = scmp.ne.s32.totalorder %s166, %s180
      %p182 = scmp.eq.s32.totalorder %s35, 0
      %p183 = por %p181, %p182
      %s185 = sadd.s32 %s184, 1
      %p188 = scmp.eq.s32.totalorder %s29, 1
      %p189 = scmp.ne.s32.totalorder %s184, %s186
      %p190 = scmp.eq.s32.totalorder %s29, 0
      %p191 = por %p189, %p190
      %p192 = scmp.ne.s32.totalorder %s184, %s186
      %p193 = scmp.eq.s32.totalorder %s34, 1
      %p194 = por %p192, %p193
      %p195 = scmp.ne.s32.totalorder %s186, %s187
      %p196 = scmp.eq.s32.totalorder %s34, 0
      %p197 = por %p195, %p196
      %p198 = scmp.ne.s32.totalorder %s186, %s187
      %p199 = scmp.eq.s32.totalorder %s35, 1
      %p200 = por %p198, %p199
      %p202 = scmp.ne.s32.totalorder %s187, %s201
      %p203 = scmp.eq.s32.totalorder %s35, 0
      %p204 = por %p202, %p203
      %s206 = sadd.s32 %s205, 1
      %p209 = scmp.eq.s32.totalorder %s29, 1
      %p210 = scmp.ne.s32.totalorder %s205, %s207
      %p211 = scmp.eq.s32.totalorder %s29, 0
      %p212 = por %p210, %p211
      %p213 = scmp.ne.s32.totalorder %s205, %s207
      %p214 = scmp.eq.s32.totalorder %s34, 1
      %p215 = por %p213, %p214
      %p216 = scmp.ne.s32.totalorder %s207, %s208
      %p217 = scmp.eq.s32.totalorder %s34, 0
      %p218 = por %p216, %p217
      %p219 = scmp.ne.s32.totalorder %s207, %s208
      %p220 = scmp.eq.s32.totalorder %s35, 1
      %p221 = por %p219, %p220
      %p223 = scmp.ne.s32.totalorder %s208, %s222
      %p224 = scmp.eq.s32.totalorder %s35, 0
      %p225 = por %p223, %p224
      %s227 = sadd.s32 %s226, 1
      %p230 = scmp.eq.s32.totalorder %s29, 1
      %p231 = scmp.ne.s32.totalorder %s226, %s228
      %p232 = scmp.eq.s32.totalorder %s29, 0
      %p233 = por %p231, %p232
      %p234 = scmp.ne.s32.totalorder %s226, %s228
      %p235 = scmp.eq.s32.totalorder %s34, 1
      %p236 = por %p234, %p235
      %p237 = scmp.ne.s32.totalorder %s228, %s229
      %p238 = scmp.eq.s32.totalorder %s34, 0
      %p239 = por %p237, %p238
      %p240 = scmp.ne.s32.totalorder %s228, %s229
      %p241 = scmp.eq.s32.totalorder %s35, 1
      %p242 = por %p240, %p241
      %p244 = scmp.ne.s32.totalorder %s229, %s243
      %p245 = scmp.eq.s32.totalorder %s35, 0
      %p246 = por %p244, %p245
      %s248 = sadd.s32 %s247, 1
      %p251 = scmp.eq.s32.totalorder %s29, 1
      %p252 = scmp.ne.s32.totalorder %s247, %s249
      %p253 = scmp.eq.s32.totalorder %s29, 0
      %p254 = por %p252, %p253
      %p255 = scmp.ne.s32.totalorder %s247, %s249
      %p256 = scmp.eq.s32.totalorder %s34, 1
      %p257 = por %p255, %p256
      %p258 = scmp.ne.s32.totalorder %s249, %s250
      %p259 = scmp.eq.s32.totalorder %s34, 0
      %p260 = por %p258, %p259
      %p261 = scmp.ne.s32.totalorder %s249, %s250
      %p262 = scmp.eq.s32.totalorder %s35, 1
      %p263 = por %p261, %p262
      %p265 = scmp.ne.s32.totalorder %s250, %s264
      %p266 = scmp.eq.s32.totalorder %s35, 0
      %p267 = por %p265, %p266
      %s269 = sadd.s32 %s268, 1
      %p272 = scmp.eq.s32.totalorder %s29, 1
      %p273 = scmp.ne.s32.totalorder %s268, %s270
      %p274 = scmp.eq.s32.totalorder %s29, 0
      %p275 = por %p273, %p274
      %p276 = scmp.ne.s32.totalorder %s268, %s270
      %p277 = scmp.eq.s32.totalorder %s34, 1
      %p278 = por %p276, %p277
      %p279 = scmp.ne.s32.totalorder %s270, %s271
      %p280 = scmp.eq.s32.totalorder %s34, 0
      %p281 = por %p279, %p280
      %p282 = scmp.ne.s32.totalorder %s270, %s271
      %p283 = scmp.eq.s32.totalorder %s35, 1
      %p284 = por %p282, %p283
      %p286 = scmp.ne.s32.totalorder %s271, %s285
      %p287 = scmp.eq.s32.totalorder %s35, 0
      %p288 = por %p286, %p287
      %s290 = sadd.s32 %s289, 1
      %p293 = scmp.eq.s32.totalorder %s29, 1
      %p294 = scmp.ne.s32.totalorder %s289, %s291
      %p295 = scmp.eq.s32.totalorder %s29, 0
      %p296 = por %p294, %p295
      %p297 = scmp.ne.s32.totalorder %s289, %s291
      %p298 = scmp.eq.s32.totalorder %s34, 1
      %p299 = por %p297, %p298
      %p300 = scmp.ne.s32.totalorder %s291, %s292
      %p301 = scmp.eq.s32.totalorder %s34, 0
      %p302 = por %p300, %p301
      %p303 = scmp.ne.s32.totalorder %s291, %s292
      %p304 = scmp.eq.s32.totalorder %s35, 1
      %p305 = por %p303, %p304
      %p307 = scmp.ne.s32.totalorder %s292, %s306
      %p308 = scmp.eq.s32.totalorder %s35, 0
      %p309 = por %p307, %p308
      %s311 = sadd.s32 %s310, 1
      %p314 = scmp.eq.s32.totalorder %s29, 1
      %p315 = scmp.ne.s32.totalorder %s310, %s312
      %p316 = scmp.eq.s32.totalorder %s29, 0
      %p317 = por %p315, %p316
      %p318 = scmp.ne.s32.totalorder %s310, %s312
      %p319 = scmp.eq.s32.totalorder %s34, 1
      %p320 = por %p318, %p319
      %p321 = scmp.ne.s32.totalorder %s312, %s313
      %p322 = scmp.eq.s32.totalorder %s34, 0
      %p323 = por %p321, %p322
      %p324 = scmp.ne.s32.totalorder %s312, %s313
      %p325 = scmp.eq.s32.totalorder %s35, 1
      %p326 = por %p324, %p325
      %p328 = scmp.ne.s32.totalorder %s313, %s327
      %p329 = scmp.eq.s32.totalorder %s35, 0
      %p330 = por %p328, %p329
      %s332 = sadd.s32 %s331, 1
      %p335 = scmp.eq.s32.totalorder %s29, 1
      %p336 = scmp.ne.s32.totalorder %s331, %s333
      %p337 = scmp.eq.s32.totalorder %s29, 0
      %p338 = por %p336, %p337
      %p339 = scmp.ne.s32.totalorder %s331, %s333
      %p340 = scmp.eq.s32.totalorder %s34, 1
      %p341 = por %p339, %p340
      %p342 = scmp.ne.s32.totalorder %s333, %s334
      %p343 = scmp.eq.s32.totalorder %s34, 0
      %p344 = por %p342, %p343
      %p345 = scmp.ne.s32.totalorder %s333, %s334
      %p346 = scmp.eq.s32.totalorder %s35, 1
      %p347 = por %p345, %p346
      %p349 = scmp.ne.s32.totalorder %s334, %s348
      %p350 = scmp.eq.s32.totalorder %s35, 0
      %p351 = por %p349, %p350
      %s353 = sadd.s32 %s352, 1
      %p356 = scmp.eq.s32.totalorder %s29, 1
      %p357 = scmp.ne.s32.totalorder %s352, %s354
      %p358 = scmp.eq.s32.totalorder %s29, 0
      %p359 = por %p357, %p358
      %p360 = scmp.ne.s32.totalorder %s352, %s354
      %p361 = scmp.eq.s32.totalorder %s34, 1
      %p362 = por %p360, %p361
      %p363 = scmp.ne.s32.totalorder %s354, %s355
      %p364 = scmp.eq.s32.totalorder %s34, 0
      %p365 = por %p363, %p364
      %p366 = scmp.ne.s32.totalorder %s354, %s355
      %p367 = scmp.eq.s32.totalorder %s35, 1
      %p368 = por %p366, %p367
      %p370 = scmp.ne.s32.totalorder %s355, %s369
      %p371 = scmp.eq.s32.totalorder %s35, 0
      %p372 = por %p370, %p371
      %s373 = ssub.s32 %s29, %s36
      %p374 = scmp.eq.s32.totalorder %s373, 0
      %s376 = sadd.s32 %s375, 1
      %s377 = scalar_select %p374, %s375, %s376
      %p380 = pneg %p374
      %p381 = scmp.eq.s32.totalorder %s29, 1
      %p382 = por %p380, %p381
      %p383 = scmp.ne.s32.totalorder %s375, %s378
      %p384 = scmp.eq.s32.totalorder %s29, 0
      %p385 = por %p383, %p384
      %p386 = scmp.ne.s32.totalorder %s375, %s378
      %p387 = scmp.eq.s32.totalorder %s34, 1
      %p388 = por %p386, %p387
      %p389 = scmp.ne.s32.totalorder %s378, %s379
      %p390 = scmp.eq.s32.totalorder %s34, 0
      %p391 = por %p389, %p390
      %p392 = scmp.ne.s32.totalorder %s378, %s379
      %p393 = scmp.eq.s32.totalorder %s35, 1
      %p394 = por %p392, %p393
      %p396 = scmp.ne.s32.totalorder %s379, %s395
      %p397 = scmp.eq.s32.totalorder %s35, 0
      %p398 = por %p396, %p397
      %p399 = scmp.le.s32.totalorder 1, %s29
      %p400 = scmp.lt.s32.totalorder %s29, 3
      %p401 = pnand %p399, %p400
      %p402 = pneg %p401
      // Predicated region
      $region9: #{tpu_custom_call.1} parent=5 // pred_check
        _
      $region10: #{tpu_custom_call.1} parent=5 // pred_check_branch
        %404 = sbr.rel (%p401) target = $region12
      $region11: #{tpu_custom_call.1} parent=5 // pred_region
        %s405 = ssub.s32 %s29, 1
        // Predicated region
        $region13: #{tpu_custom_call.1} parent=11 // pred_check
          %p406 = pneg %p50
        $region14: #{tpu_custom_call.1} parent=11 // pred_check_branch
          %408 = sbr.rel (%p406) target = $region16
        $region15: #{tpu_custom_call.1} parent=11 // pred_region
          _
        $region16: #{tpu_custom_call.1} parent=11 // pred_fallthru
          _
        // Predicated region
        $region17: #{tpu_custom_call.1} parent=11 // pred_check
          %p409 = pneg %p71
        $region18: #{tpu_custom_call.1} parent=11 // pred_check_branch
          %411 = sbr.rel (%p409) target = $region20
        $region19: #{tpu_custom_call.1} parent=11 // pred_region
          _
        $region20: #{tpu_custom_call.1} parent=11 // pred_fallthru
          _
        // Predicated region
        $region21: #{tpu_custom_call.1} parent=11 // pred_check
          %p412 = pneg %p92
        $region22: #{tpu_custom_call.1} parent=11 // pred_check_branch
          %414 = sbr.rel (%p412) target = $region24
        $region23: #{tpu_custom_call.1} parent=11 // pred_region
          %416 = vsyncadd [#allocation6], 0
          %s417 = sshll.u32 %s2, 4
          %s418 = int_to_ptr.hbm [resolvable:$true] %s417
          %s419 = sshll.u32 [#allocation5], 4
          %s420 = int_to_ptr.vmem [resolvable:$true] %s419
          %425 = dma.hbm_to_vmem [thread:$0]  %s418, 192, %s420, [#allocation6], 64, 64, 4
        $region24: #{tpu_custom_call.1} parent=11 // pred_fallthru
          _
        // Predicated region
        $region25: #{tpu_custom_call.1} parent=11 // pred_check
          %p426 = pneg %p113
        $region26: #{tpu_custom_call.1} parent=11 // pred_check_branch
          %428 = sbr.rel (%p426) target = $region28
        $region27: #{tpu_custom_call.1} parent=11 // pred_region
          %430 = vsyncadd [#allocation9], 0
          %s432 = sshll.u32 %s3, 4
          %s433 = int_to_ptr.hbm [resolvable:$true] %s432
          %s434 = sshll.u32 [#allocation8], 4
          %s435 = int_to_ptr.vmem [resolvable:$true] %s434
          %437 = dma.hbm_to_vmem [thread:$0]  %s433, 64, %s435, [#allocation9]
        $region28: #{tpu_custom_call.1} parent=11 // pred_fallthru
          _
        // Predicated region
        $region29: #{tpu_custom_call.1} parent=11 // pred_check
          %p438 = pneg %p134
        $region30: #{tpu_custom_call.1} parent=11 // pred_check_branch
          %440 = sbr.rel (%p438) target = $region32
        $region31: #{tpu_custom_call.1} parent=11 // pred_region
          _
        $region32: #{tpu_custom_call.1} parent=11 // pred_fallthru
          _
        // Predicated region
        $region33: #{tpu_custom_call.1} parent=11 // pred_check
          %p441 = pneg %p155
        $region34: #{tpu_custom_call.1} parent=11 // pred_check_branch
          %443 = sbr.rel (%p441) target = $region36
        $region35: #{tpu_custom_call.1} parent=11 // pred_region
          _
        $region36: #{tpu_custom_call.1} parent=11 // pred_fallthru
          _
        // Predicated region
        $region37: #{tpu_custom_call.1} parent=11 // pred_check
          %p444 = pneg %p176
        $region38: #{tpu_custom_call.1} parent=11 // pred_check_branch
          %446 = sbr.rel (%p444) target = $region40
        $region39: #{tpu_custom_call.1} parent=11 // pred_region
          _
        $region40: #{tpu_custom_call.1} parent=11 // pred_fallthru
          _
        // Predicated region
        $region41: #{tpu_custom_call.1} parent=11 // pred_check
          %p447 = pneg %p197
        $region42: #{tpu_custom_call.1} parent=11 // pred_check_branch
          %449 = sbr.rel (%p447) target = $region44
        $region43: #{tpu_custom_call.1} parent=11 // pred_region
          _
        $region44: #{tpu_custom_call.1} parent=11 // pred_fallthru
          _
        // Predicated region
        $region45: #{tpu_custom_call.1} parent=11 // pred_check
          %p450 = pneg %p218
        $region46: #{tpu_custom_call.1} parent=11 // pred_check_branch
          %452 = sbr.rel (%p450) target = $region48
        $region47: #{tpu_custom_call.1} parent=11 // pred_region
          %454 = vsyncadd [#allocation9], 0
          %s455 = sshll.u32 %s8, 4
          %s456 = int_to_ptr.hbm [resolvable:$true] %s455
          %s457 = sshll.u32 [#allocation10], 4
          %s458 = int_to_ptr.vmem [resolvable:$true] %s457
          %463 = dma.hbm_to_vmem [thread:$0]  %s456, 768, %s458, [#allocation9], 64, 64, 4
        $region48: #{tpu_custom_call.1} parent=11 // pred_fallthru
          _
        // Predicated region
        $region49: #{tpu_custom_call.1} parent=11 // pred_check
          %p464 = pneg %p239
        $region50: #{tpu_custom_call.1} parent=11 // pred_check_branch
          %466 = sbr.rel (%p464) target = $region52
        $region51: #{tpu_custom_call.1} parent=11 // pred_region
          _
        $region52: #{tpu_custom_call.1} parent=11 // pred_fallthru
          _
        // Predicated region
        $region53: #{tpu_custom_call.1} parent=11 // pred_check
          %p467 = pneg %p260
        $region54: #{tpu_custom_call.1} parent=11 // pred_check_branch
          %469 = sbr.rel (%p467) target = $region56
        $region55: #{tpu_custom_call.1} parent=11 // pred_region
          _
        $region56: #{tpu_custom_call.1} parent=11 // pred_fallthru
          _
        // Predicated region
        $region57: #{tpu_custom_call.1} parent=11 // pred_check
          %p470 = pneg %p281
        $region58: #{tpu_custom_call.1} parent=11 // pred_check_branch
          %472 = sbr.rel (%p470) target = $region60
        $region59: #{tpu_custom_call.1} parent=11 // pred_region
          _
        $region60: #{tpu_custom_call.1} parent=11 // pred_fallthru
          _
        // Predicated region
        $region61: #{tpu_custom_call.1} parent=11 // pred_check
          %p473 = pneg %p302
        $region62: #{tpu_custom_call.1} parent=11 // pred_check_branch
          %475 = sbr.rel (%p473) target = $region64
        $region63: #{tpu_custom_call.1} parent=11 // pred_region
          _
        $region64: #{tpu_custom_call.1} parent=11 // pred_fallthru
          _
        // Predicated region
        $region65: #{tpu_custom_call.1} parent=11 // pred_check
          %p476 = pneg %p323
        $region66: #{tpu_custom_call.1} parent=11 // pred_check_branch
          %478 = sbr.rel (%p476) target = $region68
        $region67: #{tpu_custom_call.1} parent=11 // pred_region
          _
        $region68: #{tpu_custom_call.1} parent=11 // pred_fallthru
          _
        // Predicated region
        $region69: #{tpu_custom_call.1} parent=11 // pred_check
          %p479 = pneg %p344
        $region70: #{tpu_custom_call.1} parent=11 // pred_check_branch
          %481 = sbr.rel (%p479) target = $region72
        $region71: #{tpu_custom_call.1} parent=11 // pred_region
          _
        $region72: #{tpu_custom_call.1} parent=11 // pred_fallthru
          _
        // Predicated region
        $region73: #{tpu_custom_call.1} parent=11 // pred_check
          %p482 = pneg %p365
        $region74: #{tpu_custom_call.1} parent=11 // pred_check_branch
          %484 = sbr.rel (%p482) target = $region76
        $region75: #{tpu_custom_call.1} parent=11 // pred_region
          _
        $region76: #{tpu_custom_call.1} parent=11 // pred_fallthru
          _
      $region12: #{tpu_custom_call.1} parent=5 // pred_fallthru
        _
      %p485 = scmp.lt.s32.totalorder %s29, 2
      // Predicated region
      $region77: #{tpu_custom_call.1} parent=5 // pred_check
        %p486 = pneg %p485
      $region78: #{tpu_custom_call.1} parent=5 // pred_check_branch
        %488 = sbr.rel (%p486) target = $region80
      $region79: #{tpu_custom_call.1} parent=5 // pred_region
        _
      $region80: #{tpu_custom_call.1} parent=5 // pred_fallthru
        _
      %p489 = scmp.le.s32.totalorder 1, %s29
      %p490 = scmp.lt.s32.totalorder %s29, 3
      %p491 = pnand %p489, %p490
      %p492 = pneg %p491
      // Predicated region
      $region81: #{tpu_custom_call.1} parent=5 // pred_check
        _
      $region82: #{tpu_custom_call.1} parent=5 // pred_check_branch
        %494 = sbr.rel (%p491) target = $region84
      $region83: #{tpu_custom_call.1} parent=5 // pred_region
        %s495 = ssub.s32 %s29, 1
        // Predicated region
        $region85: #{tpu_custom_call.1} parent=83 // pred_check
          %p496 = pneg %p92
        $region86: #{tpu_custom_call.1} parent=83 // pred_check_branch
          %498 = sbr.rel (%p496) target = $region88
        $region87: #{tpu_custom_call.1} parent=83 // pred_region
          %500 = dma.done [#allocation6], 192
        $region88: #{tpu_custom_call.1} parent=83 // pred_fallthru
          _
        // Predicated region
        $region89: #{tpu_custom_call.1} parent=83 // pred_check
          %p501 = pneg %p113
        $region90: #{tpu_custom_call.1} parent=83 // pred_check_branch
          %503 = sbr.rel (%p501) target = $region92
        $region91: #{tpu_custom_call.1} parent=83 // pred_region
          %505 = dma.done [#allocation9], 64
        $region92: #{tpu_custom_call.1} parent=83 // pred_fallthru
          _
        // Predicated region
        $region93: #{tpu_custom_call.1} parent=83 // pred_check
          %p506 = pneg %p218
        $region94: #{tpu_custom_call.1} parent=83 // pred_check_branch
          %508 = sbr.rel (%p506) target = $region96
        $region95: #{tpu_custom_call.1} parent=83 // pred_region
          %510 = dma.done [#allocation9], 768
        $region96: #{tpu_custom_call.1} parent=83 // pred_fallthru
          _
        %p511 = pneg %p50
        %p512 = pneg %p47
        %p513 = pneg %p71
        %p514 = pneg %p68
        %p515 = pneg %p92
        %p516 = pneg %p89
        %p517 = pneg %p113
        %p518 = pneg %p110
        %p519 = pneg %p134
        %p520 = pneg %p131
        %p521 = pneg %p155
        %p522 = pneg %p152
        %p523 = pneg %p176
        %p524 = pneg %p173
        %p525 = pneg %p197
        %p526 = pneg %p194
        %p527 = pneg %p218
        %p528 = pneg %p215
        %p529 = pneg %p239
        %p530 = pneg %p236
        %p531 = pneg %p260
        %p532 = pneg %p257
        %p533 = pneg %p281
        %p534 = pneg %p278
        %p535 = pneg %p302
        %p536 = pneg %p299
        %p537 = pneg %p323
        %p538 = pneg %p320
        %p539 = pneg %p344
        %p540 = pneg %p341
        %p541 = pneg %p365
        %p542 = pneg %p362
        %p543 = pneg %p391
        %p544 = pneg %p388
        %s545 = sand.u32 %s378, 1
        %s546 = scalar_lea.sflag [#allocation7], %s545
        %s547 = sand.u32 %s378, 1
        %s548 = smul.addr %s547, 8
        %s549 = scalar_lea.vmem [#allocation11], %s548
        %p551 = scmp.eq.s32.totalorder %s34, 0
        // Predicated region
        $region97: #{tpu_custom_call.1} parent=83 // pred_check
          %p552 = pneg %p551
        $region98: #{tpu_custom_call.1} parent=83 // pred_check_branch
          %554 = sbr.rel (%p552) target = $region100
        $region99: #{tpu_custom_call.1} parent=83 // pred_region
          %v555 = vld [vmem:[%s0] sm:$0xf]
          %v556 = vld [vmem:[%s0 + $0x4] sm:$0xf]
          %v557 = vld [vmem:[%s1] sm:$0xff]
          %v558 = vld [vmem:[%s1 + $0x8] sm:$0xff]
          %v559 = vpack.c.bf16 %v558, %v557
          %v560 = vld [vmem:[#allocation5] sm:$0xf]
          %vm561 = vcmask 64512
          %v563 = vsel %vm561, %v559, 0
          %vm565 = vcmask 1043456
          %v567 = vsel %vm565, %v560, 0
          %569 = vmatpush.bf16.msra.mxu0 0
          %570 = vmatpush.bf16.msra.mxu0 0
          %571 = vmatpush.bf16.msra.mxu0 0
          %572 = vmatpush.bf16.msra.mxu0 0
          %573 = vmatpush.bf16.msra.mxu0 0
          %574 = vmatpush.bf16.msra.mxu0 0
          %575 = vmatpush.bf16.msra.mxu0 0
          %576 = vmatpush.bf16.msra.mxu0 %v567
          %577 = vmatmul.bf16.gmra.mxu0 %v563
          %v578 = vpop.f32.mrf.mxu0
          %v579 = vadd.f32 0.0, %v578
          %v580 = vpop.f32.mrf.mxu0
          %v581 = vadd.f32 0.0, %v580
          %582 = vdwg.mxu0
          %s583 = scalar_lea.vmem [#allocation5], 4
          %v584 = vld [vmem:[%s583] sm:$0xf]
          %v586 = vsel %vm565, %v584, 0
          %588 = vmatpush.bf16.msra.mxu0 0
          %589 = vmatpush.bf16.msra.mxu0 0
          %590 = vmatpush.bf16.msra.mxu0 0
          %591 = vmatpush.bf16.msra.mxu0 0
          %592 = vmatpush.bf16.msra.mxu0 0
          %593 = vmatpush.bf16.msra.mxu0 0
          %594 = vmatpush.bf16.msra.mxu0 0
          %595 = vmatpush.bf16.msra.mxu0 %v586
          %596 = vmatmul.bf16.gmra.mxu0 %v563
          %v597 = vpop.f32.mrf.mxu0
          %v598 = vadd.f32 0.0, %v597
          %v599 = vpop.f32.mrf.mxu0
          %v600 = vadd.f32 0.0, %v599
          %601 = vdwg.mxu0
          %s602 = scalar_lea.vmem [#allocation5], 8
          %v603 = vld [vmem:[%s602] sm:$0xf]
          %v605 = vsel %vm565, %v603, 0
          %607 = vmatpush.bf16.msra.mxu0 0
          %608 = vmatpush.bf16.msra.mxu0 0
          %609 = vmatpush.bf16.msra.mxu0 0
          %610 = vmatpush.bf16.msra.mxu0 0
          %611 = vmatpush.bf16.msra.mxu0 0
          %612 = vmatpush.bf16.msra.mxu0 0
          %613 = vmatpush.bf16.msra.mxu0 0
          %614 = vmatpush.bf16.msra.mxu0 %v605
          %615 = vmatmul.bf16.gmra.mxu0 %v563
          %v616 = vpop.f32.mrf.mxu0
          %v617 = vadd.f32 0.0, %v616
          %v618 = vpop.f32.mrf.mxu0
          %v619 = vadd.f32 0.0, %v618
          %620 = vdwg.mxu0
          %v621 = vpack.c.bf16 %v581, %v579
          %v622 = vpack.c.bf16 %v600, %v598
          %v623 = vpack.c.bf16 %v619, %v617
          %v624 = vld [vmem:[#allocation8] sm:$0xf]
          %v626 = vsel %vm565, %v624, 0
          %628 = vmatpush.bf16.msra.mxu0 0
          %629 = vmatpush.bf16.msra.mxu0 0
          %630 = vmatpush.bf16.msra.mxu0 0
          %631 = vmatpush.bf16.msra.mxu0 0
          %632 = vmatpush.bf16.msra.mxu0 0
          %633 = vmatpush.bf16.msra.mxu0 0
          %634 = vmatpush.bf16.msra.mxu0 0
          %635 = vmatpush.bf16.msra.mxu0 %v626
          %636 = vmatmul.bf16.gmra.mxu0 %v563
          %v637 = vpop.f32.mrf.mxu0
          %v638 = vadd.f32 0.0, %v637
          %v639 = vpop.f32.mrf.mxu0
          %v640 = vadd.f32 0.0, %v639
          %641 = vdwg.mxu0
          %v644 = vunpack.c.l.b16 %v555
          %v645 = vunpack.c.l.b16 %v556
          %v646 = vpack.c.b16 %v645, %v644
          %vm647 = vcmask 392192
          %v649 = vsel %vm647, %v646, 0
          %651 = vmatpush.bf16.msra.mxu0 0
          %652 = vmatpush.bf16.msra.mxu0 0
          %653 = vmatpush.bf16.msra.mxu0 0
          %654 = vmatpush.bf16.msra.mxu0 0
          %655 = vmatpush.bf16.msra.mxu0 0
          %656 = vmatpush.bf16.msra.mxu0 %v623
          %657 = vmatpush.bf16.msra.mxu0 %v622
          %658 = vmatpush.bf16.msra.mxu0 %v621
          %659 = vmatmul.bf16.gmra.mxu0 %v649
          %v660 = vpop.f32.mrf.mxu0
          %v661 = vadd.f32 %v638, %v660
          %v662 = vpop.f32.mrf.mxu0
          %v663 = vadd.f32 %v640, %v662
          %664 = vdwg.mxu0
          %v665 = vld [vmem:[%s4] sm:$0x1]
          %v667 = vperm.slane %v665, 0
          %v669 = vadd.f32 %v661, %v667
          %v670 = vadd.f32 %v663, %v667
          %v671 = vmax.f32 %v669, 0.0
          %v672 = vmax.f32 %v670, 0.0
          %v673 = vpack.c.bf16 %v672, %v671
          %v674 = vld [vmem:[%s5] sm:$0xf]
          %v675 = vld [vmem:[%s5 + $0x4] sm:$0xf]
          %v676 = vld [vmem:[%s5 + $0x8] sm:$0xf]
          %v677 = vld [vmem:[%s5 + $0xc] sm:$0xf]
          %v682 = vunpack.c.l.b16 %v674
          %v683 = vunpack.c.l.b16 %v675
          %v684 = vunpack.c.l.b16 %v676
          %v685 = vunpack.c.l.b16 %v677
          %v686 = vpack.c.b16 %v683, %v682
          %v687 = vpack.c.b16 %v685, %v684
          %vm690 = vcmask 261120
          %v692 = vsel %vm690, %v673, 0
          %694 = vmatpush.bf16.msra.mxu0 0
          %695 = vmatpush.bf16.msra.mxu0 0
          %696 = vmatpush.bf16.msra.mxu0 0
          %697 = vmatpush.bf16.msra.mxu0 0
          %698 = vmatpush.bf16.msra.mxu0 0
          %699 = vmatpush.bf16.msra.mxu0 0
          %700 = vmatpush.bf16.msra.mxu0 %v687
          %701 = vmatpush.bf16.msra.mxu0 %v686
          %702 = vmatmul.bf16.gmra.mxu0 %v692
          %v703 = vpop.f32.mrf.mxu0
          %v704 = vadd.f32 0.0, %v703
          %v705 = vpop.f32.mrf.mxu0
          %v706 = vadd.f32 0.0, %v705
          %707 = vdwg.mxu0
          %s708 = scalar_lea.vmem %s5, 16
          %v709 = vld [vmem:[%s708] sm:$0xf]
          %v710 = vld [vmem:[%s708 + $0x4] sm:$0xf]
          %v711 = vld [vmem:[%s708 + $0x8] sm:$0xf]
          %v712 = vld [vmem:[%s708 + $0xc] sm:$0xf]
          %v717 = vunpack.c.l.b16 %v709
          %v718 = vunpack.c.l.b16 %v710
          %v719 = vunpack.c.l.b16 %v711
          %v720 = vunpack.c.l.b16 %v712
          %v721 = vpack.c.b16 %v718, %v717
          %v722 = vpack.c.b16 %v720, %v719
          %725 = vmatpush.bf16.msra.mxu0 0
          %726 = vmatpush.bf16.msra.mxu0 0
          %727 = vmatpush.bf16.msra.mxu0 0
          %728 = vmatpush.bf16.msra.mxu0 0
          %729 = vmatpush.bf16.msra.mxu0 0
          %730 = vmatpush.bf16.msra.mxu0 0
          %731 = vmatpush.bf16.msra.mxu0 %v722
          %732 = vmatpush.bf16.msra.mxu0 %v721
          %733 = vmatmul.bf16.gmra.mxu0 %v692
          %v734 = vpop.f32.mrf.mxu0
          %v735 = vadd.f32 0.0, %v734
          %v736 = vpop.f32.mrf.mxu0
          %v737 = vadd.f32 0.0, %v736
          %738 = vdwg.mxu0
          %s739 = scalar_lea.vmem %s5, 32
          %v740 = vld [vmem:[%s739] sm:$0xf]
          %v741 = vld [vmem:[%s739 + $0x4] sm:$0xf]
          %v742 = vld [vmem:[%s739 + $0x8] sm:$0xf]
          %v743 = vld [vmem:[%s739 + $0xc] sm:$0xf]
          %v748 = vunpack.c.l.b16 %v740
          %v749 = vunpack.c.l.b16 %v741
          %v750 = vunpack.c.l.b16 %v742
          %v751 = vunpack.c.l.b16 %v743
          %v752 = vpack.c.b16 %v749, %v748
          %v753 = vpack.c.b16 %v751, %v750
          %756 = vmatpush.bf16.msra.mxu0 0
          %757 = vmatpush.bf16.msra.mxu0 0
          %758 = vmatpush.bf16.msra.mxu0 0
          %759 = vmatpush.bf16.msra.mxu0 0
          %760 = vmatpush.bf16.msra.mxu0 0
          %761 = vmatpush.bf16.msra.mxu0 0
          %762 = vmatpush.bf16.msra.mxu0 %v753
          %763 = vmatpush.bf16.msra.mxu0 %v752
          %764 = vmatmul.bf16.gmra.mxu0 %v692
          %v765 = vpop.f32.mrf.mxu0
          %v766 = vadd.f32 0.0, %v765
          %v767 = vpop.f32.mrf.mxu0
          %v768 = vadd.f32 0.0, %v767
          %769 = vdwg.mxu0
          %v770 = vpack.c.bf16 %v706, %v704
          %v771 = vpack.c.bf16 %v737, %v735
          %v772 = vpack.c.bf16 %v768, %v766
          %v773 = vld [vmem:[%s6] sm:$0xf]
          %v774 = vld [vmem:[%s6 + $0x4] sm:$0xf]
          %v775 = vld [vmem:[%s6 + $0x8] sm:$0xf]
          %v776 = vld [vmem:[%s6 + $0xc] sm:$0xf]
          %v781 = vunpack.c.l.b16 %v773
          %v782 = vunpack.c.l.b16 %v774
          %v783 = vunpack.c.l.b16 %v775
          %v784 = vunpack.c.l.b16 %v776
          %v785 = vpack.c.b16 %v782, %v781
          %v786 = vpack.c.b16 %v784, %v783
          %789 = vmatpush.bf16.msra.mxu0 0
          %790 = vmatpush.bf16.msra.mxu0 0
          %791 = vmatpush.bf16.msra.mxu0 0
          %792 = vmatpush.bf16.msra.mxu0 0
          %793 = vmatpush.bf16.msra.mxu0 0
          %794 = vmatpush.bf16.msra.mxu0 0
          %795 = vmatpush.bf16.msra.mxu0 %v786
          %796 = vmatpush.bf16.msra.mxu0 %v785
          %797 = vmatmul.bf16.gmra.mxu0 %v692
          %v798 = vpop.f32.mrf.mxu0
          %v799 = vadd.f32 0.0, %v798
          %v800 = vpop.f32.mrf.mxu0
          %v801 = vadd.f32 0.0, %v800
          %802 = vdwg.mxu0
          %803 = vmatpush.bf16.msra.mxu0 0
          %804 = vmatpush.bf16.msra.mxu0 0
          %805 = vmatpush.bf16.msra.mxu0 0
          %806 = vmatpush.bf16.msra.mxu0 0
          %807 = vmatpush.bf16.msra.mxu0 0
          %808 = vmatpush.bf16.msra.mxu0 %v772
          %809 = vmatpush.bf16.msra.mxu0 %v771
          %810 = vmatpush.bf16.msra.mxu0 %v770
          %811 = vmatmul.bf16.gmra.mxu0 %v649
          %v812 = vpop.f32.mrf.mxu0
          %v813 = vadd.f32 %v799, %v812
          %v814 = vpop.f32.mrf.mxu0
          %v815 = vadd.f32 %v801, %v814
          %816 = vdwg.mxu0
          %v817 = vld [vmem:[%s7] sm:$0x1]
          %v819 = vperm.slane %v817, 0
          %v821 = vadd.f32 %v813, %v819
          %v822 = vadd.f32 %v815, %v819
          %v823 = vmax.f32 %v821, 0.0
          %v824 = vmax.f32 %v822, 0.0
          %v825 = vpack.c.bf16 %v824, %v823
          %v826 = vld [vmem:[#allocation10] sm:$0xf]
          %v827 = vld [vmem:[#allocation10 + $0x4] sm:$0xf]
          %v828 = vld [vmem:[#allocation10 + $0x8] sm:$0xf]
          %v829 = vld [vmem:[#allocation10 + $0xc] sm:$0xf]
          %v834 = vunpack.c.l.b16 %v826
          %v835 = vunpack.c.l.b16 %v827
          %v836 = vunpack.c.l.b16 %v828
          %v837 = vunpack.c.l.b16 %v829
          %v838 = vpack.c.b16 %v835, %v834
          %v839 = vpack.c.b16 %v837, %v836
          %v843 = vsel %vm690, %v825, 0
          %845 = vmatpush.bf16.msra.mxu0 0
          %846 = vmatpush.bf16.msra.mxu0 0
          %847 = vmatpush.bf16.msra.mxu0 0
          %848 = vmatpush.bf16.msra.mxu0 0
          %849 = vmatpush.bf16.msra.mxu0 0
          %850 = vmatpush.bf16.msra.mxu0 0
          %851 = vmatpush.bf16.msra.mxu0 %v839
          %852 = vmatpush.bf16.msra.mxu0 %v838
          %853 = vmatmul.bf16.gmra.mxu0 %v843
          %v854 = vpop.f32.mrf.mxu0
          %v855 = vadd.f32 0.0, %v854
          %v856 = vpop.f32.mrf.mxu0
          %v857 = vadd.f32 0.0, %v856
          %858 = vdwg.mxu0
          %s859 = scalar_lea.vmem [#allocation10], 16
          %v860 = vld [vmem:[%s859] sm:$0xf]
          %v861 = vld [vmem:[%s859 + $0x4] sm:$0xf]
          %v862 = vld [vmem:[%s859 + $0x8] sm:$0xf]
          %v863 = vld [vmem:[%s859 + $0xc] sm:$0xf]
          %v868 = vunpack.c.l.b16 %v860
          %v869 = vunpack.c.l.b16 %v861
          %v870 = vunpack.c.l.b16 %v862
          %v871 = vunpack.c.l.b16 %v863
          %v872 = vpack.c.b16 %v869, %v868
          %v873 = vpack.c.b16 %v871, %v870
          %876 = vmatpush.bf16.msra.mxu0 0
          %877 = vmatpush.bf16.msra.mxu0 0
          %878 = vmatpush.bf16.msra.mxu0 0
          %879 = vmatpush.bf16.msra.mxu0 0
          %880 = vmatpush.bf16.msra.mxu0 0
          %881 = vmatpush.bf16.msra.mxu0 0
          %882 = vmatpush.bf16.msra.mxu0 %v873
          %883 = vmatpush.bf16.msra.mxu0 %v872
          %884 = vmatmul.bf16.gmra.mxu0 %v843
          %v885 = vpop.f32.mrf.mxu0
          %v886 = vadd.f32 0.0, %v885
          %v887 = vpop.f32.mrf.mxu0
          %v888 = vadd.f32 0.0, %v887
          %889 = vdwg.mxu0
          %s890 = scalar_lea.vmem [#allocation10], 32
          %v891 = vld [vmem:[%s890] sm:$0xf]
          %v892 = vld [vmem:[%s890 + $0x4] sm:$0xf]
          %v893 = vld [vmem:[%s890 + $0x8] sm:$0xf]
          %v894 = vld [vmem:[%s890 + $0xc] sm:$0xf]
          %v899 = vunpack.c.l.b16 %v891
          %v900 = vunpack.c.l.b16 %v892
          %v901 = vunpack.c.l.b16 %v893
          %v902 = vunpack.c.l.b16 %v894
          %v903 = vpack.c.b16 %v900, %v899
          %v904 = vpack.c.b16 %v902, %v901
          %907 = vmatpush.bf16.msra.mxu0 0
          %908 = vmatpush.bf16.msra.mxu0 0
          %909 = vmatpush.bf16.msra.mxu0 0
          %910 = vmatpush.bf16.msra.mxu0 0
          %911 = vmatpush.bf16.msra.mxu0 0
          %912 = vmatpush.bf16.msra.mxu0 0
          %913 = vmatpush.bf16.msra.mxu0 %v904
          %914 = vmatpush.bf16.msra.mxu0 %v903
          %915 = vmatmul.bf16.gmra.mxu0 %v843
          %v916 = vpop.f32.mrf.mxu0
          %v917 = vadd.f32 0.0, %v916
          %v918 = vpop.f32.mrf.mxu0
          %v919 = vadd.f32 0.0, %v918
          %920 = vdwg.mxu0
          %v921 = vpack.c.bf16 %v857, %v855
          %v922 = vpack.c.bf16 %v888, %v886
          %v923 = vpack.c.bf16 %v919, %v917
          %v924 = vld [vmem:[%s9] sm:$0xf]
          %v925 = vld [vmem:[%s9 + $0x4] sm:$0xf]
          %v926 = vld [vmem:[%s9 + $0x8] sm:$0xf]
          %v927 = vld [vmem:[%s9 + $0xc] sm:$0xf]
          %v932 = vunpack.c.l.b16 %v924
          %v933 = vunpack.c.l.b16 %v925
          %v934 = vunpack.c.l.b16 %v926
          %v935 = vunpack.c.l.b16 %v927
          %v936 = vpack.c.b16 %v933, %v932
          %v937 = vpack.c.b16 %v935, %v934
          %940 = vmatpush.bf16.msra.mxu0 0
          %941 = vmatpush.bf16.msra.mxu0 0
          %942 = vmatpush.bf16.msra.mxu0 0
          %943 = vmatpush.bf16.msra.mxu0 0
          %944 = vmatpush.bf16.msra.mxu0 0
          %945 = vmatpush.bf16.msra.mxu0 0
          %946 = vmatpush.bf16.msra.mxu0 %v937
          %947 = vmatpush.bf16.msra.mxu0 %v936
          %948 = vmatmul.bf16.gmra.mxu0 %v843
          %v949 = vpop.f32.mrf.mxu0
          %v950 = vadd.f32 0.0, %v949
          %v951 = vpop.f32.mrf.mxu0
          %v952 = vadd.f32 0.0, %v951
          %953 = vdwg.mxu0
          %954 = vmatpush.bf16.msra.mxu0 0
          %955 = vmatpush.bf16.msra.mxu0 0
          %956 = vmatpush.bf16.msra.mxu0 0
          %957 = vmatpush.bf16.msra.mxu0 0
          %958 = vmatpush.bf16.msra.mxu0 0
          %959 = vmatpush.bf16.msra.mxu0 %v923
          %960 = vmatpush.bf16.msra.mxu0 %v922
          %961 = vmatpush.bf16.msra.mxu0 %v921
          %962 = vmatmul.bf16.gmra.mxu0 %v649
          %v963 = vpop.f32.mrf.mxu0
          %v964 = vadd.f32 %v950, %v963
          %v965 = vpop.f32.mrf.mxu0
          %v966 = vadd.f32 %v952, %v965
          %967 = vdwg.mxu0
          %v968 = vld [vmem:[%s10] sm:$0x1]
          %v970 = vperm.slane %v968, 0
          %v972 = vadd.f32 %v964, %v970
          %v973 = vadd.f32 %v966, %v970
          %v974 = vmax.f32 %v972, 0.0
          %v975 = vmax.f32 %v973, 0.0
          %v976 = vpack.c.bf16 %v975, %v974
          %v977 = vld [vmem:[%s11] sm:$0xf]
          %v978 = vld [vmem:[%s11 + $0x4] sm:$0xf]
          %v979 = vld [vmem:[%s11 + $0x8] sm:$0xf]
          %v980 = vld [vmem:[%s11 + $0xc] sm:$0xf]
          %v985 = vunpack.c.l.b16 %v977
          %v986 = vunpack.c.l.b16 %v978
          %v987 = vunpack.c.l.b16 %v979
          %v988 = vunpack.c.l.b16 %v980
          %v989 = vpack.c.b16 %v986, %v985
          %v990 = vpack.c.b16 %v988, %v987
          %v994 = vsel %vm690, %v976, 0
          %996 = vmatpush.bf16.msra.mxu0 0
          %997 = vmatpush.bf16.msra.mxu0 0
          %998 = vmatpush.bf16.msra.mxu0 0
          %999 = vmatpush.bf16.msra.mxu0 0
          %1000 = vmatpush.bf16.msra.mxu0 0
          %1001 = vmatpush.bf16.msra.mxu0 0
          %1002 = vmatpush.bf16.msra.mxu0 %v990
          %1003 = vmatpush.bf16.msra.mxu0 %v989
          %1004 = vmatmul.bf16.gmra.mxu0 %v994
          %v1005 = vpop.f32.mrf.mxu0
          %v1006 = vadd.f32 0.0, %v1005
          %v1007 = vpop.f32.mrf.mxu0
          %v1008 = vadd.f32 0.0, %v1007
          %1009 = vdwg.mxu0
          %s1010 = scalar_lea.vmem %s11, 16
          %v1011 = vld [vmem:[%s1010] sm:$0xf]
          %v1012 = vld [vmem:[%s1010 + $0x4] sm:$0xf]
          %v1013 = vld [vmem:[%s1010 + $0x8] sm:$0xf]
          %v1014 = vld [vmem:[%s1010 + $0xc] sm:$0xf]
          %v1019 = vunpack.c.l.b16 %v1011
          %v1020 = vunpack.c.l.b16 %v1012
          %v1021 = vunpack.c.l.b16 %v1013
          %v1022 = vunpack.c.l.b16 %v1014
          %v1023 = vpack.c.b16 %v1020, %v1019
          %v1024 = vpack.c.b16 %v1022, %v1021
          %1027 = vmatpush.bf16.msra.mxu0 0
          %1028 = vmatpush.bf16.msra.mxu0 0
          %1029 = vmatpush.bf16.msra.mxu0 0
          %1030 = vmatpush.bf16.msra.mxu0 0
          %1031 = vmatpush.bf16.msra.mxu0 0
          %1032 = vmatpush.bf16.msra.mxu0 0
          %1033 = vmatpush.bf16.msra.mxu0 %v1024
          %1034 = vmatpush.bf16.msra.mxu0 %v1023
          %1035 = vmatmul.bf16.gmra.mxu0 %v994
          %v1036 = vpop.f32.mrf.mxu0
          %v1037 = vadd.f32 0.0, %v1036
          %v1038 = vpop.f32.mrf.mxu0
          %v1039 = vadd.f32 0.0, %v1038
          %1040 = vdwg.mxu0
          %s1041 = scalar_lea.vmem %s11, 32
          %v1042 = vld [vmem:[%s1041] sm:$0xf]
          %v1043 = vld [vmem:[%s1041 + $0x4] sm:$0xf]
          %v1044 = vld [vmem:[%s1041 + $0x8] sm:$0xf]
          %v1045 = vld [vmem:[%s1041 + $0xc] sm:$0xf]
          %v1050 = vunpack.c.l.b16 %v1042
          %v1051 = vunpack.c.l.b16 %v1043
          %v1052 = vunpack.c.l.b16 %v1044
          %v1053 = vunpack.c.l.b16 %v1045
          %v1054 = vpack.c.b16 %v1051, %v1050
          %v1055 = vpack.c.b16 %v1053, %v1052
          %1058 = vmatpush.bf16.msra.mxu0 0
          %1059 = vmatpush.bf16.msra.mxu0 0
          %1060 = vmatpush.bf16.msra.mxu0 0
          %1061 = vmatpush.bf16.msra.mxu0 0
          %1062 = vmatpush.bf16.msra.mxu0 0
          %1063 = vmatpush.bf16.msra.mxu0 0
          %1064 = vmatpush.bf16.msra.mxu0 %v1055
          %1065 = vmatpush.bf16.msra.mxu0 %v1054
          %1066 = vmatmul.bf16.gmra.mxu0 %v994
          %v1067 = vpop.f32.mrf.mxu0
          %v1068 = vadd.f32 0.0, %v1067
          %v1069 = vpop.f32.mrf.mxu0
          %v1070 = vadd.f32 0.0, %v1069
          %1071 = vdwg.mxu0
          %v1072 = vpack.c.bf16 %v1008, %v1006
          %v1073 = vpack.c.bf16 %v1039, %v1037
          %v1074 = vpack.c.bf16 %v1070, %v1068
          %v1075 = vld [vmem:[%s12] sm:$0xf]
          %v1076 = vld [vmem:[%s12 + $0x4] sm:$0xf]
          %v1077 = vld [vmem:[%s12 + $0x8] sm:$0xf]
          %v1078 = vld [vmem:[%s12 + $0xc] sm:$0xf]
          %v1083 = vunpack.c.l.b16 %v1075
          %v1084 = vunpack.c.l.b16 %v1076
          %v1085 = vunpack.c.l.b16 %v1077
          %v1086 = vunpack.c.l.b16 %v1078
          %v1087 = vpack.c.b16 %v1084, %v1083
          %v1088 = vpack.c.b16 %v1086, %v1085
          %1091 = vmatpush.bf16.msra.mxu0 0
          %1092 = vmatpush.bf16.msra.mxu0 0
          %1093 = vmatpush.bf16.msra.mxu0 0
          %1094 = vmatpush.bf16.msra.mxu0 0
          %1095 = vmatpush.bf16.msra.mxu0 0
          %1096 = vmatpush.bf16.msra.mxu0 0
          %1097 = vmatpush.bf16.msra.mxu0 %v1088
          %1098 = vmatpush.bf16.msra.mxu0 %v1087
          %1099 = vmatmul.bf16.gmra.mxu0 %v994
          %v1100 = vpop.f32.mrf.mxu0
          %v1101 = vadd.f32 0.0, %v1100
          %v1102 = vpop.f32.mrf.mxu0
          %v1103 = vadd.f32 0.0, %v1102
          %1104 = vdwg.mxu0
          %1105 = vmatpush.bf16.msra.mxu0 0
          %1106 = vmatpush.bf16.msra.mxu0 0
          %1107 = vmatpush.bf16.msra.mxu0 0
          %1108 = vmatpush.bf16.msra.mxu0 0
          %1109 = vmatpush.bf16.msra.mxu0 0
          %1110 = vmatpush.bf16.msra.mxu0 %v1074
          %1111 = vmatpush.bf16.msra.mxu0 %v1073
          %1112 = vmatpush.bf16.msra.mxu0 %v1072
          %1113 = vmatmul.bf16.gmra.mxu0 %v649
          %v1114 = vpop.f32.mrf.mxu0
          %v1115 = vadd.f32 %v1101, %v1114
          %v1116 = vpop.f32.mrf.mxu0
          %v1117 = vadd.f32 %v1103, %v1116
          %1118 = vdwg.mxu0
          %v1119 = vld [vmem:[%s13] sm:$0x1]
          %v1121 = vperm.slane %v1119, 0
          %v1123 = vadd.f32 %v1115, %v1121
          %v1124 = vadd.f32 %v1117, %v1121
          %v1125 = vld [vmem:[%s14] sm:$0x1]
          %v1127 = vperm.slane %v1125, 0
          %v1129 = vmul.f32 %v1123, %v1127
          %v1130 = vmul.f32 %v1124, %v1127
          %vm1131 = vcmask 130048
          %v1132 = vsel %vm1131, %v1129, 0.0
          %1133 = vadd.xlane.f32.xlu0 %v1132
          %v1134 = vpop.xlane.xlu0 %1133
          %v1135 = vsel %vm1131, %v1130, 0.0
          %1136 = vadd.xlane.f32.xlu0 %v1135
          %v1137 = vpop.xlane.xlu0 %1136
          %v1138 = vsel %vm1131, %v1125, 0
          %v1141 = vsel %vm1131, %v1123, 0
          %v1144 = vsel %vm1131, %v1124, 0
          %1146 = vmatpush.xpose.msra.mxu0 0.0
          %1147 = vmatpush.xpose.msra.mxu0 0.0
          %1148 = vmatpush.xpose.msra.mxu0 0.0
          %1149 = vmatpush.xpose.msra.mxu0 0.0
          %1150 = vmatpush.xpose.msra.mxu0 0.0
          %1151 = vmatpush.xpose.msra.mxu0 0.0
          %1152 = vmatpush.xpose.msra.mxu0 0.0
          %1153 = vmatpush.xpose.msra.mxu0 0.0
          %1154 = vmatpush.xpose.msra.mxu0 0.0
          %1155 = vmatpush.xpose.msra.mxu0 0.0
          %1156 = vmatpush.xpose.msra.mxu0 0.0
          %1157 = vmatpush.xpose.msra.mxu0 0.0
          %1158 = vmatpush.xpose.msra.mxu0 0.0
          %1159 = vmatpush.xpose.msra.mxu0 0.0
          %1160 = vmatpush.xpose.msra.mxu0 %v1144
          %1161 = vmatpush.xpose.msra.mxu0 %v1141
          %1162 = vmatmul.f32.gmra.mxu0 %v1138
          %v1163 = vpop.f32.mrf.mxu0
          %v1164 = vadd.f32 0.0, %v1163
          %1165 = vdwg.mxu0
          %vm1166 = vcmask 7168
          %1167 = vst.msk [vmem:[#allocation2] sm:$0xff] %vm1166, %v1134
          %1168 = vst.msk [vmem:[#allocation2 + $0x8] sm:$0xff] %vm1166, %v1137
          %1169 = vst [vmem:[#allocation3] sm:$0x1] 0.0
          %vm1170 = vcmask 122880
          %1171 = vst.msk [vmem:[#allocation3] sm:$0x1] %vm1170, %v1164
        $region100: #{tpu_custom_call.1} parent=83 // pred_fallthru
          _
        %s1172 = smul.u32 %s34, 8
        %s1173 = scalar_lea.vmem [#allocation2], %s1172
        %v1174 = vld [vmem:[%s1173] sm:$0xff]
        %v1175 = vld [vmem:[#allocation3] sm:$0x1]
        %1177 = vset.pattern.permute.xlu0 0
        %1178 = vperm.xlu0 %1177, %v1174
        %v1179 = vpop.permute.xlu0 %1178
        %v1182 = vperm.slane %v1175, 0
        %v1184 = vadd.f32 %v1179, %v1182
        %v1185 = vld [vmem:[#allocation4] sm:$0x1]
        %v1187 = vperm.slane %v1185, 0
        %1188 = vset.pattern.permute.xlu0 0
        %1189 = vperm.xlu0 %1188, %v1187
        %v1190 = vpop.permute.xlu0 %1189
        %v1192 = vadd.f32 %v1184, %v1190
        %1193 = vst [vmem:[%s549] sm:$0xff] %v1192
        %s1194 = sand.u32 %s378, 1
        %s1195 = scalar_lea.sflag [#allocation7], %s1194
        %s1196 = sand.u32 %s378, 1
        %s1197 = smul.addr %s1196, 8
        %s1198 = scalar_lea.vmem [#allocation11], %s1197
        // Predicated region
        $region101: #{tpu_custom_call.1} parent=83 // pred_check
          %p1199 = pneg %p388
        $region102: #{tpu_custom_call.1} parent=83 // pred_check_branch
          %1201 = sbr.rel (%p1199) target = $region104
        $region103: #{tpu_custom_call.1} parent=83 // pred_region
          %1203 = vsyncadd %s1195, 0
          %s1204 = smul.addr %s34, 8
          %s1205 = scalar_lea.hbm %s16, %s1204
          %s1207 = sshll.u32 %s1198, 4
          %s1208 = int_to_ptr.vmem [resolvable:$true] %s1207
          %s1209 = sshll.u32 %s1205, 4
          %s1210 = int_to_ptr.hbm [resolvable:$true] %s1209
          %1212 = dma.vmem_to_hbm [thread:$0]  %s1208, 128, %s1210, %s1195
        $region104: #{tpu_custom_call.1} parent=83 // pred_fallthru
          _
      $region84: #{tpu_custom_call.1} parent=5 // pred_fallthru
        _
      %p1213 = scmp.le.s32.totalorder 2, %s29
      // Predicated region
      $region105: #{tpu_custom_call.1} parent=5 // pred_check
        %p1214 = pneg %p1213
      $region106: #{tpu_custom_call.1} parent=5 // pred_check_branch
        %1216 = sbr.rel (%p1214) target = $region108
      $region107: #{tpu_custom_call.1} parent=5 // pred_region
        %s1217 = ssub.s32 %s29, 2
        // Predicated region
        $region109: #{tpu_custom_call.1} parent=107 // pred_check
          %p1218 = pneg %p394
        $region110: #{tpu_custom_call.1} parent=107 // pred_check_branch
          %1220 = sbr.rel (%p1218) target = $region112
        $region111: #{tpu_custom_call.1} parent=107 // pred_region
          %s1221 = sand.u32 %s379, 1
          %s1222 = scalar_lea.sflag [#allocation7], %s1221
          %s1223 = sand.u32 %s379, 1
          %s1224 = smul.addr %s1223, 8
          %s1225 = scalar_lea.vmem [#allocation11], %s1224
          %1227 = dma.done %s1222, 128
        $region112: #{tpu_custom_call.1} parent=107 // pred_fallthru
          _
      $region108: #{tpu_custom_call.1} parent=5 // pred_fallthru
        _
    $region6: #{tpu_custom_call.1} parent=1 // loop_footer
      %s33 = sadd.s32 1, %s29
    $region7: #{tpu_custom_call.1} parent=1 // loop_footer_branch
      %28 = sbr.rel target = $region3
    $region8: #{tpu_custom_call.1} parent=1 // loop_exit
      _
    %1228 = vsyncpa [#allocation6], 1
    %s1229 = scalar_lea.sflag [#allocation6], 1
    %1230 = vsyncpa %s1229, 1
    %1231 = vsyncpa [#allocation9], 1
    %1232 = vsyncpa [#allocation7], 1
    %s1233 = scalar_lea.sflag [#allocation7], 1
    %1234 = vsyncpa %s1233, 1

</llo_original>
